<compile_context>
chip_gen: v7x
topology: tpu7x:2x2x1
jax: 0.10.0
libtpu: 0.0.40
codegen_flags: <defaults>
</compile_context>

<pallas_src>
import math

import jax
import jax.numpy as jnp
from jax.experimental import pallas as pl
from jax.experimental.pallas import tpu as pltpu


# ----------------------------------------------------------------------------
# helpers
# ----------------------------------------------------------------------------
def _layer_norm(x, gamma, beta, eps=1e-5):
    """LayerNorm over the last axis in f32, matching torch.nn.LayerNorm."""
    mu = jnp.mean(x, axis=-1, keepdims=True)
    xc = x - mu
    var = jnp.mean(xc * xc, axis=-1, keepdims=True)
    return xc * jax.lax.rsqrt(var + eps) * gamma + beta


def _choose_tile(n, preferred):
    """Largest tile <= preferred that divides n and is a multiple of 8 (else n)."""
    if n <= preferred:
        return n
    for t in range(preferred, 0, -8):
        if n % t == 0:
            return t
    return n


def _choose_lane_tile(n, preferred):
    """Largest lane-dim tile <= preferred dividing n that is a multiple of 128,
    else the full extent n (the (8,128) rule allows full-extent blocks)."""
    if n <= preferred:
        return n
    t = (preferred // 128) * 128
    while t >= 128:
        if n % t == 0:
            return t
        t -= 128
    return n


def _pick_vmem_limit():
    """Generation-aware scoped-VMEM limit: ~96 MiB on 128-MiB parts (v5e/v6e),
    ~48 MiB on 64-MiB parts (v7x)."""
    try:
        cap = pltpu.get_tpu_info().vmem_capacity_bytes
    except Exception:  # pragma: no cover - conservative fallback
        cap = 64 * 1024 * 1024
    return int(min(96 * 1024 * 1024, (cap * 3) // 4))


# ----------------------------------------------------------------------------
# Kernel 1: multi-head attention sub-layer (+ residual + LayerNorm)
# ----------------------------------------------------------------------------
def _make_mha_kernel(n_heads, d_head, seq_len, q_tile, inv_scale, pre_norm,
                     compute_dtype, with_attn):
    d_model = n_heads * d_head
    f32 = jnp.float32

    def kernel(*refs):
        if with_attn:
            (xkv_ref, mask_ref, wq_ref, wkv_ref, wo_ref, bo_ref, g1_ref, b1_ref,
             out_ref, attn_ref, kv_ref, ho_ref) = refs
        else:
            (xkv_ref, mask_ref, wq_ref, wkv_ref, wo_ref, bo_ref, g1_ref, b1_ref,
             out_ref, kv_ref, ho_ref) = refs
            attn_ref = None

        q_idx = pl.program_id(1)
        g1 = g1_ref[...]                       # (1, d_model)
        b1 = b1_ref[...]                       # (1, d_model)
        cd = compute_dtype

        # ---- K/V projection: computed once per batch element (q_idx == 0),
        # cached in VMEM scratch.  The q axis is "arbitrary" so kv_ref persists
        # across the q tiles of this batch element.
        @pl.when(q_idx == 0)
        def _():
            xkv = xkv_ref[0].astype(f32)                       # (S, d_model)
            kv_in = _layer_norm(xkv, g1, b1) if pre_norm else xkv
            kv = jnp.dot(kv_in.astype(cd), wkv_ref[...],
                         preferred_element_type=f32)           # (S, 2*d_model)
            kv_ref[...] = kv.astype(kv_ref.dtype)

        # ---- query tile sliced out of the resident (1, S, D) x block.
        q0 = pl.multiple_of(q_idx * q_tile, q_tile)
        xq = xkv_ref[0, pl.ds(q0, q_tile), :].astype(f32)      # (TQ, d_model)
        q_in = _layer_norm(xq, g1, b1) if pre_norm else xq
        q_proj = jnp.dot(q_in.astype(cd), wq_ref[...],
                         preferred_element_type=f32)           # (TQ, d_model)

        # ---- additive mask bias, hoisted out of the head loop (single
        # compare/select/broadcast instead of one per head).
        m = mask_ref[0]                                        # (1,S) or (TQ,S)
        bias = jnp.where(m == 0.0, jnp.float32(-1e10), jnp.float32(0.0))
        bias = jnp.broadcast_to(bias, (q_tile, seq_len))       # (TQ, S)

        # TODO(synk): for very long sequences add an inner "arbitrary" K-tile
        # grid axis (flash-style online softmax); here K/V stay resident.
        for h in range(n_heads):               # statically unrolled over heads
            sl = slice(h * d_head, (h + 1) * d_head)
            vsl = slice(d_model + h * d_head, d_model + (h + 1) * d_head)
            qh = q_proj[:, sl].astype(cd)                      # (TQ, dh)
            kh = kv_ref[:, sl]                                 # (S, dh) in cd
            vh = kv_ref[:, vsl]                                # (S, dh) in cd
            # Q @ K^T by contracting the last dims -- no K transpose materialized.
            s_h = jax.lax.dot_general(qh, kh, (((1,), (1,)), ((), ())),
                                      preferred_element_type=f32)   # (TQ, S)
            s_h = s_h * inv_scale + bias
            # Numerically-stable softmax over the key axis (f32), exact recip
            # so stored probabilities sum to 1 in every dtype path.
            mx = jnp.max(s_h, axis=-1, keepdims=True)
            e = jnp.exp(s_h - mx)
            denom = jnp.sum(e, axis=-1, keepdims=True)
            p_h = e * pl.reciprocal(denom, approx=False)       # (TQ, S)
            if with_attn:
                attn_ref[0, h] = p_h.astype(attn_ref.dtype)
            # TODO(synk): attn_dropout is identity in eval mode.
            hv = jnp.dot(p_h.astype(cd), vh,
                         preferred_element_type=f32)           # (TQ, dh)
            ho_ref[:, sl] = hv.astype(ho_ref.dtype)            # head concat

        proj = jnp.dot(ho_ref[...], wo_ref[...],
                       preferred_element_type=f32) + bo_ref[...]
        # TODO(synk): projection / residual dropout are identity in eval mode.
        res = xq + proj
        out = res if pre_norm else _layer_norm(res, g1, b1)
        out_ref[0] = out.astype(out_ref.dtype)

    return kernel


def _mha_sublayer(x, mask3, w_q, w_kv, w_o, b_o, g1, b1, *, n_heads, pre_norm,
                  compute_dtype, attn_dtype, q_block, return_attention,
                  vmem_limit_bytes):
    B, S, D = x.shape
    H = n_heads
    dh = D // H
    TQ = _choose_tile(S, q_block)
    nq = S // TQ
    Qm = mask3.shape[1]                  # 1 (padding mask) or S (causal mask)

    kernel = _make_mha_kernel(H, dh, S, TQ, 1.0 / math.sqrt(dh), pre_norm,
                              compute_dtype, return_attention)

    if Qm == 1:
        mask_spec = pl.BlockSpec((1, 1, S), lambda b, q: (b, 0, 0))
    else:
        mask_spec = pl.BlockSpec((1, TQ, S), lambda b, q: (b, q, 0))

    in_specs = [
        pl.BlockSpec((1, S, D), lambda b, q: (b, 0, 0)),      # x (q tile sliced in-kernel)
        mask_spec,                                            # (B, Qm, S) mask
        pl.BlockSpec((D, D), lambda b, q: (0, 0)),            # W_q (all heads)
        pl.BlockSpec((D, 2 * D), lambda b, q: (0, 0)),        # [W_k | W_v]
        pl.BlockSpec((D, D), lambda b, q: (0, 0)),            # W_o
        pl.BlockSpec((1, D), lambda b, q: (0, 0)),            # b_o
        pl.BlockSpec((1, D), lambda b, q: (0, 0)),            # LayerNorm1 gamma
        pl.BlockSpec((1, D), lambda b, q: (0, 0)),            # LayerNorm1 beta
    ]
    out_spec_x = pl.BlockSpec((1, TQ, D), lambda b, q: (b, q, 0))
    if return_attention:
        out_specs = (out_spec_x,
                     pl.BlockSpec((1, H, TQ, S), lambda b, q: (b, 0, q, 0)))
        out_shape = (jax.ShapeDtypeStruct((B, S, D), x.dtype),
                     jax.ShapeDtypeStruct((B, H, S, S), attn_dtype))
    else:
        out_specs = out_spec_x
        out_shape = jax.ShapeDtypeStruct((B, S, D), x.dtype)

    grid_spec = pltpu.PrefetchScalarGridSpec(
        num_scalar_prefetch=0,
        grid=(B, nq),
        in_specs=in_specs,
        out_specs=out_specs,
        scratch_shapes=[
            pltpu.VMEM((S, 2 * D), compute_dtype),   # cached [K|V] projection
            pltpu.VMEM((TQ, D), compute_dtype),      # concatenated head outputs
        ],
    )

    # Pre-cast weights to the MXU compute dtype (halves DMA + VMEM when bf16).
    w_q = w_q.astype(compute_dtype)
    w_kv = w_kv.astype(compute_dtype)
    w_o = w_o.astype(compute_dtype)

    result = pl.pallas_call(
        kernel,
        out_shape=out_shape,
        grid_spec=grid_spec,
        compiler_params=pltpu.CompilerParams(
            # batch is megacore-parallel; q must be "arbitrary" so the cached
            # K/V scratch legally persists across q tiles.
            dimension_semantics=("parallel", "arbitrary"),
            vmem_limit_bytes=vmem_limit_bytes),
    )(x, mask3, w_q, w_kv, w_o, b_o, g1, b1)

    if return_attention:
        return result
    return result, None


# ----------------------------------------------------------------------------
# Kernel 2: feed-forward sub-layer (+ residual + LayerNorm), d_ff-tiled
# ----------------------------------------------------------------------------
def _make_ffn_kernel(pre_norm, compute_dtype):
    f32 = jnp.float32

    def kernel(x_ref, w1_ref, b1_ref, w2_ref, b2_ref, g2_ref, be2_ref, out_ref,
               acc_ref):
        k = pl.program_id(1)
        nk = pl.num_programs(1)
        cd = compute_dtype

        @pl.when(k == 0)
        def _():
            acc_ref[...] = jnp.zeros_like(acc_ref)

        x = x_ref[...].astype(f32)                            # (TR, d_model)
        g2 = g2_ref[...]
        be2 = be2_ref[...]
        xin = _layer_norm(x, g2, be2) if pre_norm else x

        h = jnp.dot(xin.astype(cd), w1_ref[...],
                    preferred_element_type=f32) + b1_ref[...]  # (TR, t_ff)
        h = jnp.maximum(h, 0.0).astype(cd)     # fused ReLU + cast (one live copy)
        # TODO(synk): FeedForward dropout is identity in eval mode.
        acc_ref[...] += jnp.dot(h, w2_ref[...],
                                preferred_element_type=f32)    # (TR, d_model)

        @pl.when(k == nk - 1)
        def _():
            y = acc_ref[...] + b2_ref[...]
            res = x + y
            out = res if pre_norm else _layer_norm(res, g2, be2)
            out_ref[...] = out.astype(out_ref.dtype)

    return kernel


def _ffn_sublayer(x, w1, b1, w2, b2, g2, be2, *, pre_norm, compute_dtype,
                  row_block, ff_block, vmem_limit_bytes):
    B, S, D = x.shape
    d_ff = w1.shape[1]
    N = B * S
    TR = _choose_tile(N, row_block)
    nr = N // TR
    TF = _choose_lane_tile(d_ff, ff_block)     # d_ff reduction tile (v7x VMEM)
    nk = d_ff // TF
    x2 = x.reshape(N, D)     # pack batch rows so one grid step fills the MXU

    # Pre-cast weights to the MXU compute dtype outside the kernel.
    w1 = w1.astype(compute_dtype)
    w2 = w2.astype(compute_dtype)

    kernel = _make_ffn_kernel(pre_norm, compute_dtype)
    grid_spec = pltpu.PrefetchScalarGridSpec(
        num_scalar_prefetch=0,
        grid=(nr, nk),
        in_specs=[
            pl.BlockSpec((TR, D), lambda r, k: (r, 0)),       # activations row tile
            pl.BlockSpec((D, TF), lambda r, k: (0, k)),       # W_ff1 column tile
            pl.BlockSpec((1, TF), lambda r, k: (0, k)),       # b_ff1 tile
            pl.BlockSpec((TF, D), lambda r, k: (k, 0)),       # W_ff2 row tile
            pl.BlockSpec((1, D), lambda r, k: (0, 0)),        # b_ff2
            pl.BlockSpec((1, D), lambda r, k: (0, 0)),        # LayerNorm2 gamma
            pl.BlockSpec((1, D), lambda r, k: (0, 0)),        # LayerNorm2 beta
        ],
        out_specs=pl.BlockSpec((TR, D), lambda r, k: (r, 0)),
        scratch_shapes=[pltpu.VMEM((TR, D), jnp.float32)],    # y accumulator
    )
    out = pl.pallas_call(
        kernel,
        out_shape=jax.ShapeDtypeStruct((N, D), x.dtype),
        grid_spec=grid_spec,
        compiler_params=pltpu.CompilerParams(
            dimension_semantics=("parallel", "arbitrary"),
            vmem_limit_bytes=vmem_limit_bytes),
    )(x2, w1, b1, w2, b2, g2, be2)
    return out.reshape(B, S, D)


# ----------------------------------------------------------------------------
# Full encoder-layer forward
# ----------------------------------------------------------------------------
def transformer_encoder_layer_forward(x, mask, params, n_heads, *,
                                      pre_norm=False,
                                      compute_dtype=jnp.bfloat16,
                                      attn_dtype=None,
                                      return_attention=True,
                                      q_block=256, row_block=512,
                                      ff_block=2048,
                                      vmem_limit_bytes=None):
    """Eval-mode TransformerEncoderLayer.forward.

    x:    (B, S, d_model) float32
    mask: (B, 1, 1, S) padding mask or (B, 1, S, S) causal; zeros are masked.
    Returns (out, attention): out is (B, S, d_model); attention is
    (B, n_heads, S, S) (the tensor that would be appended to self_scores), or
    None when return_attention=False.
    """
    B, S, D = x.shape
    if attn_dtype is None:
        attn_dtype = (jnp.float32 if compute_dtype == jnp.float32
                      else jnp.bfloat16)
    if vmem_limit_bytes is None:
        vmem_limit_bytes = _pick_vmem_limit()

    # Keep the mask compact: only squeeze the head axis (no (B, Q, K) broadcast).
    mask3 = mask.reshape(B, mask.shape[-2], mask.shape[-1]).astype(jnp.float32)
    w_kv = jnp.concatenate([params["w_k"], params["w_v"]], axis=1)
    row = lambda v: v.reshape(1, -1)

    attn_out, attention = _mha_sublayer(
        x, mask3, params["w_q"], w_kv, params["w_o"], row(params["b_o"]),
        row(params["ln1_g"]), row(params["ln1_b"]),
        n_heads=n_heads, pre_norm=pre_norm, compute_dtype=compute_dtype,
        attn_dtype=attn_dtype, q_block=q_block,
        return_attention=return_attention, vmem_limit_bytes=vmem_limit_bytes)

    out = _ffn_sublayer(
        attn_out, params["w_ff1"], row(params["b_ff1"]),
        params["w_ff2"], row(params["b_ff2"]),
        row(params["ln2_g"]), row(params["ln2_b"]),
        pre_norm=pre_norm, compute_dtype=compute_dtype, row_block=row_block,
        ff_block=ff_block, vmem_limit_bytes=vmem_limit_bytes)
    return out, attention


# ----------------------------------------------------------------------------
# Pure-JAX reference (mirrors the PyTorch module in eval mode)
# ----------------------------------------------------------------------------
def _reference(x, mask, params, n_heads, pre_norm):
    B, S, D = x.shape
    H = n_heads
    dh = D // H

    def ln(v, g, b):
        mu = v.mean(-1, keepdims=True)
        var = ((v - mu) ** 2).mean(-1, keepdims=True)
        return (v - mu) / jnp.sqrt(var + 1e-5) * g + b

    def mha(q_in, kv_in):
        Q = q_in @ params["w_q"]
        K = kv_in @ params["w_k"]
        V = kv_in @ params["w_v"]
        Qh = Q.reshape(B, S, H, dh).transpose(0, 2, 1, 3)
        Kh = K.reshape(B, S, H, dh).transpose(0, 2, 3, 1)
        Vh = V.reshape(B, S, H, dh).transpose(0, 2, 1, 3)
        scores = (Qh @ Kh) / jnp.sqrt(float(dh))
        scores = jnp.where(mask == 0, -1e10, scores)
        attn = jax.nn.softmax(scores, axis=-1)
        ho = (attn @ Vh).transpose(0, 2, 1, 3).reshape(B, S, D)
        return ho @ params["w_o"] + params["b_o"], attn

    def ff(v):
        h = jax.nn.relu(v @ params["w_ff1"] + params["b_ff1"])
        return h @ params["w_ff2"] + params["b_ff2"]

    if pre_norm:
        xn = ln(x, params["ln1_g"], params["ln1_b"])
        a, attn = mha(xn, xn)
        out1 = x + a
        out2 = out1 + ff(ln(out1, params["ln2_g"], params["ln2_b"]))
    else:
        a, attn = mha(x, x)
        out1 = ln(x + a, params["ln1_g"], params["ln1_b"])
        out2 = ln(out1 + ff(out1), params["ln2_g"], params["ln2_b"])
    return out2, attn


if __name__ == "__main__":
    B, S = 2, 16
    d_model, n_heads, d_ff = 32, 4, 64

    key = jax.random.PRNGKey(0)
    ks = jax.random.split(key, 12)

    def uni(k, shape, fan_in):
        bound = 1.0 / math.sqrt(fan_in)
        return jax.random.uniform(k, shape, jnp.float32, -bound, bound)

    params = {
        "w_q": uni(ks[0], (d_model, d_model), d_model),
        "w_k": uni(ks[1], (d_model, d_model), d_model),
        "w_v": uni(ks[2], (d_model, d_model), d_model),
        "w_o": uni(ks[3], (d_model, d_model), d_model),
        "b_o": uni(ks[4], (d_model,), d_model),
        "ln1_g": jnp.ones((d_model,), jnp.float32),
        "ln1_b": jnp.zeros((d_model,), jnp.float32),
        "w_ff1": uni(ks[5], (d_model, d_ff), d_model),
        "b_ff1": uni(ks[6], (d_ff,), d_model),
        "w_ff2": uni(ks[7], (d_ff, d_model), d_ff),
        "b_ff2": uni(ks[8], (d_model,), d_ff),
        "ln2_g": jnp.ones((d_model,), jnp.float32),
        "ln2_b": jnp.zeros((d_model,), jnp.float32),
    }

    x = jax.random.normal(ks[9], (B, S, d_model), jnp.float32)
    # Padding-style mask (B, 1, 1, S); zeros mark masked-out key positions.
    mask = (jax.random.uniform(ks[10], (B, 1, 1, S)) > 0.25).astype(jnp.float32)
    mask = mask.at[..., 0].set(1.0)   # at least one unmasked key per batch

    # 1) Post-norm, f32 compute path, q_block=8 so nq=2 exercises the
    #    persistent KV cache across q tiles.
    out, attn = transformer_encoder_layer_forward(
        x, mask, params, n_heads, pre_norm=False, compute_dtype=jnp.float32,
        q_block=8)
    jax.block_until_ready((out, attn))
    ref_out, ref_attn = _reference(x, mask, params, n_heads, False)
    assert jnp.allclose(out, ref_out, atol=1e-4, rtol=1e-4), (
        f"post-norm out mismatch: {jnp.max(jnp.abs(out - ref_out))}")
    assert jnp.allclose(attn, ref_attn, atol=1e-4, rtol=1e-4), (
        f"attention mismatch: {jnp.max(jnp.abs(attn - ref_attn))}")

    # 2) Post-norm, bf16 MXU operands, attention output skipped (fast path).
    out_bf16, attn_none = transformer_encoder_layer_forward(
        x, mask, params, n_heads, pre_norm=False, compute_dtype=jnp.bfloat16,
        return_attention=False)
    jax.block_until_ready(out_bf16)
    assert attn_none is None
    assert jnp.allclose(out_bf16, ref_out, atol=8e-2, rtol=8e-2), (
        f"bf16 out mismatch: {jnp.max(jnp.abs(out_bf16 - ref_out))}")

    # 3) Pre-norm variant, f32 compute, attention returned.
    out_pre, attn_pre = transformer_encoder_layer_forward(
        x, mask, params, n_heads, pre_norm=True, compute_dtype=jnp.float32)
    jax.block_until_ready((out_pre, attn_pre))
    ref_pre, ref_attn_pre = _reference(x, mask, params, n_heads, True)
    assert jnp.allclose(out_pre, ref_pre, atol=1e-4, rtol=1e-4), (
        f"pre-norm out mismatch: {jnp.max(jnp.abs(out_pre - ref_pre))}")
    assert jnp.allclose(attn_pre, ref_attn_pre, atol=1e-4, rtol=1e-4), (
        f"pre-norm attention mismatch: {jnp.max(jnp.abs(attn_pre - ref_attn_pre))}")

    print("KERNEL_OK")
</pallas_src>

<mosaic_0001>
module attributes {stable_mosaic.version = 11 : i64} {
  func.func @kernel(%arg0: i32, %arg1: i32, %arg2: memref<1x16x32xf32, #tpu.memory_space<vmem>>, %arg3: memref<1x1x16xf32, #tpu.memory_space<vmem>>, %arg4: memref<32x32xf32, #tpu.memory_space<vmem>>, %arg5: memref<32x64xf32, #tpu.memory_space<vmem>>, %arg6: memref<32x32xf32, #tpu.memory_space<vmem>>, %arg7: memref<1x32xf32, #tpu.memory_space<vmem>>, %arg8: memref<1x32xf32, #tpu.memory_space<vmem>>, %arg9: memref<1x32xf32, #tpu.memory_space<vmem>>, %arg10: memref<1x8x32xf32, #tpu.memory_space<vmem>>, %arg11: memref<1x4x8x16xf32, #tpu.memory_space<vmem>>, %arg12: memref<16x64xf32, #tpu.memory_space<vmem>>, %arg13: memref<8x32xf32, #tpu.memory_space<vmem>>) attributes {dimension_semantics = [#tpu.dimension_semantics<parallel>, #tpu.dimension_semantics<arbitrary>], iteration_bounds = array<i64: 2, 2>, scalar_prefetch = 0 : i64, scratch_operands = 2 : i64, tpu.core_type = #tpu.core_type<tc>, window_params = [{transform_indices = @transform_0, window_bounds = array<i64: 1, 16, 32>}, {transform_indices = @transform_1, window_bounds = array<i64: 1, 1, 16>}, {pipeline_mode = #tpu.pipeline_mode<synchronous>, transform_indices = @transform_2, window_bounds = array<i64: 32, 32>}, {pipeline_mode = #tpu.pipeline_mode<synchronous>, transform_indices = @transform_3, window_bounds = array<i64: 32, 64>}, {pipeline_mode = #tpu.pipeline_mode<synchronous>, transform_indices = @transform_4, window_bounds = array<i64: 32, 32>}, {pipeline_mode = #tpu.pipeline_mode<synchronous>, transform_indices = @transform_5, window_bounds = array<i64: 1, 32>}, {pipeline_mode = #tpu.pipeline_mode<synchronous>, transform_indices = @transform_6, window_bounds = array<i64: 1, 32>}, {pipeline_mode = #tpu.pipeline_mode<synchronous>, transform_indices = @transform_7, window_bounds = array<i64: 1, 32>}, {transform_indices = @transform_8, window_bounds = array<i64: 1, 8, 32>}, {transform_indices = @transform_9, window_bounds = array<i64: 1, 4, 8, 16>}]} {
    %c0 = arith.constant 0 : index
    %c0_0 = arith.constant 0 : index
    %0 = vector.load %arg8[%c0, %c0_0] : memref<1x32xf32, #tpu.memory_space<vmem>>, vector<1x32xf32>
    %c0_1 = arith.constant 0 : index
    %c0_2 = arith.constant 0 : index
    %1 = vector.load %arg9[%c0_1, %c0_2] : memref<1x32xf32, #tpu.memory_space<vmem>>, vector<1x32xf32>
    %c0_i32 = arith.constant 0 : i32
    %2 = arith.cmpi eq, %arg1, %c0_i32 : i32
    %3 = arith.extui %2 : i1 to i32
    %c0_i32_3 = arith.constant 0 : i32
    %4 = arith.cmpi ne, %3, %c0_i32_3 : i32
    scf.if %4 {
      %c0_79 = arith.constant 0 : index
      %c0_80 = arith.constant 0 : index
      %c0_81 = arith.constant 0 : index
      %139 = vector.load %arg2[%c0_79, %c0_80, %c0_81] : memref<1x16x32xf32, #tpu.memory_space<vmem>>, vector<1x16x32xf32>
      %140 = vector.shape_cast %139 : vector<1x16x32xf32> to vector<16x32xf32>
      %c0_82 = arith.constant 0 : index
      %c0_83 = arith.constant 0 : index
      %141 = vector.load %arg5[%c0_82, %c0_83] : memref<32x64xf32, #tpu.memory_space<vmem>>, vector<32x64xf32>
      %cst_84 = arith.constant dense<0.000000e+00> : vector<16x64xf32>
      %142 = tpu.matmul %140, %141, %cst_84 {dimension_numbers = #tpu.dot_dimension_numbers<[1], [0], [0], [1], [0, 0, 1, 1], [], []>} : vector<16x32xf32>, vector<32x64xf32>, vector<16x64xf32> -> vector<16x64xf32>
      %c0_85 = arith.constant 0 : index
      %c0_86 = arith.constant 0 : index
      %143 = vector.load %arg12[%c0_85, %c0_86] : memref<16x64xf32, #tpu.memory_space<vmem>>, vector<16x64xf32>
      tpu.vector_store %arg12[%c0_85, %c0_86], %142 {strides = array<i32>} : memref<16x64xf32, #tpu.memory_space<vmem>>, vector<16x64xf32>,
    } else {
    }
    %c8_i32 = arith.constant 8 : i32
    %5 = arith.muli %arg1, %c8_i32 : i32
    %6 = tpu.assume_multiple %5, 8 : i32
    %c0_4 = arith.constant 0 : index
    %7 = arith.index_cast %6 : i32 to index
    %c0_5 = arith.constant 0 : index
    %8 = vector.load %arg2[%c0_4, %7, %c0_5] : memref<1x16x32xf32, #tpu.memory_space<vmem>>, vector<1x8x32xf32>
    %9 = vector.shape_cast %8 : vector<1x8x32xf32> to vector<8x32xf32>
    %c0_6 = arith.constant 0 : index
    %c0_7 = arith.constant 0 : index
    %10 = vector.load %arg4[%c0_6, %c0_7] : memref<32x32xf32, #tpu.memory_space<vmem>>, vector<32x32xf32>
    %cst = arith.constant dense<0.000000e+00> : vector<8x32xf32>
    %11 = tpu.matmul %9, %10, %cst {dimension_numbers = #tpu.dot_dimension_numbers<[1], [0], [0], [1], [0, 0, 1, 1], [], []>} : vector<8x32xf32>, vector<32x32xf32>, vector<8x32xf32> -> vector<8x32xf32>
    %c0_8 = arith.constant 0 : index
    %c0_9 = arith.constant 0 : index
    %c0_10 = arith.constant 0 : index
    %12 = vector.load %arg3[%c0_8, %c0_9, %c0_10] : memref<1x1x16xf32, #tpu.memory_space<vmem>>, vector<1x1x16xf32>
    %13 = vector.shape_cast %12 : vector<1x1x16xf32> to vector<1x16xf32>
    %cst_11 = arith.constant 0.000000e+00 : f32
    %14 = vector.broadcast %cst_11 : f32 to vector<1x16xf32>
    %15 = arith.cmpf oeq, %13, %14 : vector<1x16xf32>
    %cst_12 = arith.constant -1.000000e+10 : f32
    %cst_13 = arith.constant 0.000000e+00 : f32
    %16 = vector.broadcast %cst_12 : f32 to vector<1x16xf32>
    %17 = vector.broadcast %cst_13 : f32 to vector<1x16xf32>
    %18 = arith.select %15, %16, %17 : vector<1x16xi1>, vector<1x16xf32>
    %19 = vector.shape_cast %18 : vector<1x16xf32> to vector<1x16xf32>
    %20 = vector.broadcast %19 : vector<1x16xf32> to vector<8x16xf32>
    %21 = vector.extract_strided_slice %11 {offsets = [0, 0], sizes = [8, 8], strides = [1, 1]} : vector<8x32xf32> to vector<8x8xf32>
    %c0_14 = arith.constant 0 : index
    %c0_15 = arith.constant 0 : index
    %22 = vector.load %arg12[%c0_14, %c0_15] : memref<16x64xf32, #tpu.memory_space<vmem>>, vector<16x8xf32>
    %c0_16 = arith.constant 0 : index
    %c32 = arith.constant 32 : index
    %23 = vector.load %arg12[%c0_16, %c32] : memref<16x64xf32, #tpu.memory_space<vmem>>, vector<16x8xf32>
    %cst_17 = arith.constant dense<0.000000e+00> : vector<8x16xf32>
    %24 = tpu.matmul %21, %22, %cst_17 {dimension_numbers = #tpu.dot_dimension_numbers<[1], [1], [0], [0], [0, 0, 1, 0], [], []>} : vector<8x8xf32>, vector<16x8xf32>, vector<8x16xf32> -> vector<8x16xf32>
    %cst_18 = arith.constant 0.353553385 : f32
    %25 = vector.broadcast %cst_18 : f32 to vector<8x16xf32>
    %26 = arith.mulf %24, %25 : vector<8x16xf32>
    %27 = arith.addf %26, %20 : vector<8x16xf32>
    %cst_19 = arith.constant dense<0xFF800000> : vector<8xf32>
    %28 = vector.multi_reduction <maximumf>, %27, %cst_19 [1] : vector<8x16xf32> to vector<8xf32>
    %29 = vector.shape_cast %28 : vector<8xf32> to vector<8x1xf32>
    %30 = vector.broadcast %29 : vector<8x1xf32> to vector<8x16xf32>
    %31 = arith.subf %27, %30 : vector<8x16xf32>
    %32 = math.exp %31 : vector<8x16xf32>
    %cst_20 = arith.constant dense<0.000000e+00> : vector<8xf32>
    %33 = vector.multi_reduction <add>, %32, %cst_20 [1] : vector<8x16xf32> to vector<8xf32>
    %34 = vector.shape_cast %33 : vector<8xf32> to vector<8x1xf32>
    %35 = tpu.reciprocal %34 : vector<8x1xf32> -> vector<8x1xf32>
    %36 = vector.broadcast %35 : vector<8x1xf32> to vector<8x16xf32>
    %37 = arith.mulf %32, %36 : vector<8x16xf32>
    %c0_21 = arith.constant 0 : index
    %c0_22 = arith.constant 0 : index
    %c0_23 = arith.constant 0 : index
    %c0_24 = arith.constant 0 : index
    %38 = vector.load %arg11[%c0_21, %c0_22, %c0_23, %c0_24] : memref<1x4x8x16xf32, #tpu.memory_space<vmem>>, vector<1x1x8x16xf32>
    %39 = vector.shape_cast %38 : vector<1x1x8x16xf32> to vector<8x16xf32>
    %40 = vector.shape_cast %37 : vector<8x16xf32> to vector<1x1x8x16xf32>
    tpu.vector_store %arg11[%c0_21, %c0_22, %c0_23, %c0_24], %40 {strides = array<i32>} : memref<1x4x8x16xf32, #tpu.memory_space<vmem>>, vector<1x1x8x16xf32>,
    %cst_25 = arith.constant dense<0.000000e+00> : vector<8x8xf32>
    %41 = tpu.matmul %37, %23, %cst_25 {dimension_numbers = #tpu.dot_dimension_numbers<[1], [0], [0], [1], [0, 0, 1, 1], [], []>} : vector<8x16xf32>, vector<16x8xf32>, vector<8x8xf32> -> vector<8x8xf32>
    %c0_26 = arith.constant 0 : index
    %c0_27 = arith.constant 0 : index
    %42 = vector.load %arg13[%c0_26, %c0_27] : memref<8x32xf32, #tpu.memory_space<vmem>>, vector<8x8xf32>
    tpu.vector_store %arg13[%c0_26, %c0_27], %41 {strides = array<i32>} : memref<8x32xf32, #tpu.memory_space<vmem>>, vector<8x8xf32>,
    %43 = vector.extract_strided_slice %11 {offsets = [0, 8], sizes = [8, 8], strides = [1, 1]} : vector<8x32xf32> to vector<8x8xf32>
    %c0_28 = arith.constant 0 : index
    %c8 = arith.constant 8 : index
    %44 = vector.load %arg12[%c0_28, %c8] : memref<16x64xf32, #tpu.memory_space<vmem>>, vector<16x8xf32>
    %c0_29 = arith.constant 0 : index
    %c40 = arith.constant 40 : index
    %45 = vector.load %arg12[%c0_29, %c40] : memref<16x64xf32, #tpu.memory_space<vmem>>, vector<16x8xf32>
    %cst_30 = arith.constant dense<0.000000e+00> : vector<8x16xf32>
    %46 = tpu.matmul %43, %44, %cst_30 {dimension_numbers = #tpu.dot_dimension_numbers<[1], [1], [0], [0], [0, 0, 1, 0], [], []>} : vector<8x8xf32>, vector<16x8xf32>, vector<8x16xf32> -> vector<8x16xf32>
    %cst_31 = arith.constant 0.353553385 : f32
    %47 = vector.broadcast %cst_31 : f32 to vector<8x16xf32>
    %48 = arith.mulf %46, %47 : vector<8x16xf32>
    %49 = arith.addf %48, %20 : vector<8x16xf32>
    %cst_32 = arith.constant dense<0xFF800000> : vector<8xf32>
    %50 = vector.multi_reduction <maximumf>, %49, %cst_32 [1] : vector<8x16xf32> to vector<8xf32>
    %51 = vector.shape_cast %50 : vector<8xf32> to vector<8x1xf32>
    %52 = vector.broadcast %51 : vector<8x1xf32> to vector<8x16xf32>
    %53 = arith.subf %49, %52 : vector<8x16xf32>
    %54 = math.exp %53 : vector<8x16xf32>
    %cst_33 = arith.constant dense<0.000000e+00> : vector<8xf32>
    %55 = vector.multi_reduction <add>, %54, %cst_33 [1] : vector<8x16xf32> to vector<8xf32>
    %56 = vector.shape_cast %55 : vector<8xf32> to vector<8x1xf32>
    %57 = tpu.reciprocal %56 : vector<8x1xf32> -> vector<8x1xf32>
    %58 = vector.broadcast %57 : vector<8x1xf32> to vector<8x16xf32>
    %59 = arith.mulf %54, %58 : vector<8x16xf32>
    %c0_34 = arith.constant 0 : index
    %c1 = arith.constant 1 : index
    %c0_35 = arith.constant 0 : index
    %c0_36 = arith.constant 0 : index
    %60 = vector.load %arg11[%c0_34, %c1, %c0_35, %c0_36] : memref<1x4x8x16xf32, #tpu.memory_space<vmem>>, vector<1x1x8x16xf32>
    %61 = vector.shape_cast %60 : vector<1x1x8x16xf32> to vector<8x16xf32>
    %62 = vector.shape_cast %59 : vector<8x16xf32> to vector<1x1x8x16xf32>
    tpu.vector_store %arg11[%c0_34, %c1, %c0_35, %c0_36], %62 {strides = array<i32>} : memref<1x4x8x16xf32, #tpu.memory_space<vmem>>, vector<1x1x8x16xf32>,
    %cst_37 = arith.constant dense<0.000000e+00> : vector<8x8xf32>
    %63 = tpu.matmul %59, %45, %cst_37 {dimension_numbers = #tpu.dot_dimension_numbers<[1], [0], [0], [1], [0, 0, 1, 1], [], []>} : vector<8x16xf32>, vector<16x8xf32>, vector<8x8xf32> -> vector<8x8xf32>
    %c0_38 = arith.constant 0 : index
    %c8_39 = arith.constant 8 : index
    %64 = vector.load %arg13[%c0_38, %c8_39] : memref<8x32xf32, #tpu.memory_space<vmem>>, vector<8x8xf32>
    tpu.vector_store %arg13[%c0_38, %c8_39], %63 {strides = array<i32>} : memref<8x32xf32, #tpu.memory_space<vmem>>, vector<8x8xf32>,
    %65 = vector.extract_strided_slice %11 {offsets = [0, 16], sizes = [8, 8], strides = [1, 1]} : vector<8x32xf32> to vector<8x8xf32>
    %c0_40 = arith.constant 0 : index
    %c16 = arith.constant 16 : index
    %66 = vector.load %arg12[%c0_40, %c16] : memref<16x64xf32, #tpu.memory_space<vmem>>, vector<16x8xf32>
    %c0_41 = arith.constant 0 : index
    %c48 = arith.constant 48 : index
    %67 = vector.load %arg12[%c0_41, %c48] : memref<16x64xf32, #tpu.memory_space<vmem>>, vector<16x8xf32>
    %cst_42 = arith.constant dense<0.000000e+00> : vector<8x16xf32>
    %68 = tpu.matmul %65, %66, %cst_42 {dimension_numbers = #tpu.dot_dimension_numbers<[1], [1], [0], [0], [0, 0, 1, 0], [], []>} : vector<8x8xf32>, vector<16x8xf32>, vector<8x16xf32> -> vector<8x16xf32>
    %cst_43 = arith.constant 0.353553385 : f32
    %69 = vector.broadcast %cst_43 : f32 to vector<8x16xf32>
    %70 = arith.mulf %68, %69 : vector<8x16xf32>
    %71 = arith.addf %70, %20 : vector<8x16xf32>
    %cst_44 = arith.constant dense<0xFF800000> : vector<8xf32>
    %72 = vector.multi_reduction <maximumf>, %71, %cst_44 [1] : vector<8x16xf32> to vector<8xf32>
    %73 = vector.shape_cast %72 : vector<8xf32> to vector<8x1xf32>
    %74 = vector.broadcast %73 : vector<8x1xf32> to vector<8x16xf32>
    %75 = arith.subf %71, %74 : vector<8x16xf32>
    %76 = math.exp %75 : vector<8x16xf32>
    %cst_45 = arith.constant dense<0.000000e+00> : vector<8xf32>
    %77 = vector.multi_reduction <add>, %76, %cst_45 [1] : vector<8x16xf32> to vector<8xf32>
    %78 = vector.shape_cast %77 : vector<8xf32> to vector<8x1xf32>
    %79 = tpu.reciprocal %78 : vector<8x1xf32> -> vector<8x1xf32>
    %80 = vector.broadcast %79 : vector<8x1xf32> to vector<8x16xf32>
    %81 = arith.mulf %76, %80 : vector<8x16xf32>
    %c0_46 = arith.constant 0 : index
    %c2 = arith.constant 2 : index
    %c0_47 = arith.constant 0 : index
    %c0_48 = arith.constant 0 : index
    %82 = vector.load %arg11[%c0_46, %c2, %c0_47, %c0_48] : memref<1x4x8x16xf32, #tpu.memory_space<vmem>>, vector<1x1x8x16xf32>
    %83 = vector.shape_cast %82 : vector<1x1x8x16xf32> to vector<8x16xf32>
    %84 = vector.shape_cast %81 : vector<8x16xf32> to vector<1x1x8x16xf32>
    tpu.vector_store %arg11[%c0_46, %c2, %c0_47, %c0_48], %84 {strides = array<i32>} : memref<1x4x8x16xf32, #tpu.memory_space<vmem>>, vector<1x1x8x16xf32>,
    %cst_49 = arith.constant dense<0.000000e+00> : vector<8x8xf32>
    %85 = tpu.matmul %81, %67, %cst_49 {dimension_numbers = #tpu.dot_dimension_numbers<[1], [0], [0], [1], [0, 0, 1, 1], [], []>} : vector<8x16xf32>, vector<16x8xf32>, vector<8x8xf32> -> vector<8x8xf32>
    %c0_50 = arith.constant 0 : index
    %c16_51 = arith.constant 16 : index
    %86 = vector.load %arg13[%c0_50, %c16_51] : memref<8x32xf32, #tpu.memory_space<vmem>>, vector<8x8xf32>
    tpu.vector_store %arg13[%c0_50, %c16_51], %85 {strides = array<i32>} : memref<8x32xf32, #tpu.memory_space<vmem>>, vector<8x8xf32>,
    %87 = vector.extract_strided_slice %11 {offsets = [0, 24], sizes = [8, 8], strides = [1, 1]} : vector<8x32xf32> to vector<8x8xf32>
    %c0_52 = arith.constant 0 : index
    %c24 = arith.constant 24 : index
    %88 = vector.load %arg12[%c0_52, %c24] : memref<16x64xf32, #tpu.memory_space<vmem>>, vector<16x8xf32>
    %c0_53 = arith.constant 0 : index
    %c56 = arith.constant 56 : index
    %89 = vector.load %arg12[%c0_53, %c56] : memref<16x64xf32, #tpu.memory_space<vmem>>, vector<16x8xf32>
    %cst_54 = arith.constant dense<0.000000e+00> : vector<8x16xf32>
    %90 = tpu.matmul %87, %88, %cst_54 {dimension_numbers = #tpu.dot_dimension_numbers<[1], [1], [0], [0], [0, 0, 1, 0], [], []>} : vector<8x8xf32>, vector<16x8xf32>, vector<8x16xf32> -> vector<8x16xf32>
    %cst_55 = arith.constant 0.353553385 : f32
    %91 = vector.broadcast %cst_55 : f32 to vector<8x16xf32>
    %92 = arith.mulf %90, %91 : vector<8x16xf32>
    %93 = arith.addf %92, %20 : vector<8x16xf32>
    %cst_56 = arith.constant dense<0xFF800000> : vector<8xf32>
    %94 = vector.multi_reduction <maximumf>, %93, %cst_56 [1] : vector<8x16xf32> to vector<8xf32>
    %95 = vector.shape_cast %94 : vector<8xf32> to vector<8x1xf32>
    %96 = vector.broadcast %95 : vector<8x1xf32> to vector<8x16xf32>
    %97 = arith.subf %93, %96 : vector<8x16xf32>
    %98 = math.exp %97 : vector<8x16xf32>
    %cst_57 = arith.constant dense<0.000000e+00> : vector<8xf32>
    %99 = vector.multi_reduction <add>, %98, %cst_57 [1] : vector<8x16xf32> to vector<8xf32>
    %100 = vector.shape_cast %99 : vector<8xf32> to vector<8x1xf32>
    %101 = tpu.reciprocal %100 : vector<8x1xf32> -> vector<8x1xf32>
    %102 = vector.broadcast %101 : vector<8x1xf32> to vector<8x16xf32>
    %103 = arith.mulf %98, %102 : vector<8x16xf32>
    %c0_58 = arith.constant 0 : index
    %c3 = arith.constant 3 : index
    %c0_59 = arith.constant 0 : index
    %c0_60 = arith.constant 0 : index
    %104 = vector.load %arg11[%c0_58, %c3, %c0_59, %c0_60] : memref<1x4x8x16xf32, #tpu.memory_space<vmem>>, vector<1x1x8x16xf32>
    %105 = vector.shape_cast %104 : vector<1x1x8x16xf32> to vector<8x16xf32>
    %106 = vector.shape_cast %103 : vector<8x16xf32> to vector<1x1x8x16xf32>
    tpu.vector_store %arg11[%c0_58, %c3, %c0_59, %c0_60], %106 {strides = array<i32>} : memref<1x4x8x16xf32, #tpu.memory_space<vmem>>, vector<1x1x8x16xf32>,
    %cst_61 = arith.constant dense<0.000000e+00> : vector<8x8xf32>
    %107 = tpu.matmul %103, %89, %cst_61 {dimension_numbers = #tpu.dot_dimension_numbers<[1], [0], [0], [1], [0, 0, 1, 1], [], []>} : vector<8x16xf32>, vector<16x8xf32>, vector<8x8xf32> -> vector<8x8xf32>
    %c0_62 = arith.constant 0 : index
    %c24_63 = arith.constant 24 : index
    %108 = vector.load %arg13[%c0_62, %c24_63] : memref<8x32xf32, #tpu.memory_space<vmem>>, vector<8x8xf32>
    tpu.vector_store %arg13[%c0_62, %c24_63], %107 {strides = array<i32>} : memref<8x32xf32, #tpu.memory_space<vmem>>, vector<8x8xf32>,
    %c0_64 = arith.constant 0 : index
    %c0_65 = arith.constant 0 : index
    %109 = vector.load %arg13[%c0_64, %c0_65] : memref<8x32xf32, #tpu.memory_space<vmem>>, vector<8x32xf32>
    %c0_66 = arith.constant 0 : index
    %c0_67 = arith.constant 0 : index
    %110 = vector.load %arg6[%c0_66, %c0_67] : memref<32x32xf32, #tpu.memory_space<vmem>>, vector<32x32xf32>
    %cst_68 = arith.constant dense<0.000000e+00> : vector<8x32xf32>
    %111 = tpu.matmul %109, %110, %cst_68 {dimension_numbers = #tpu.dot_dimension_numbers<[1], [0], [0], [1], [0, 0, 1, 1], [], []>} : vector<8x32xf32>, vector<32x32xf32>, vector<8x32xf32> -> vector<8x32xf32>
    %c0_69 = arith.constant 0 : index
    %c0_70 = arith.constant 0 : index
    %112 = vector.load %arg7[%c0_69, %c0_70] : memref<1x32xf32, #tpu.memory_space<vmem>>, vector<1x32xf32>
    %113 = vector.broadcast %112 : vector<1x32xf32> to vector<8x32xf32>
    %114 = arith.addf %111, %113 : vector<8x32xf32>
    %115 = arith.addf %9, %114 : vector<8x32xf32>
    %cst_71 = arith.constant dense<0.000000e+00> : vector<8xf32>
    %116 = vector.multi_reduction <add>, %115, %cst_71 [1] : vector<8x32xf32> to vector<8xf32>
    %117 = vector.shape_cast %116 : vector<8xf32> to vector<8x1xf32>
    %cst_72 = arith.constant 3.200000e+01 : f32
    %118 = vector.broadcast %cst_72 : f32 to vector<8x1xf32>
    %119 = arith.divf %117, %118 : vector<8x1xf32>
    %120 = vector.broadcast %119 : vector<8x1xf32> to vector<8x32xf32>
    %121 = arith.subf %115, %120 : vector<8x32xf32>
    %122 = arith.mulf %121, %121 : vector<8x32xf32>
    %cst_73 = arith.constant dense<0.000000e+00> : vector<8xf32>
    %123 = vector.multi_reduction <add>, %122, %cst_73 [1] : vector<8x32xf32> to vector<8xf32>
    %124 = vector.shape_cast %123 : vector<8xf32> to vector<8x1xf32>
    %cst_74 = arith.constant 3.200000e+01 : f32
    %125 = vector.broadcast %cst_74 : f32 to vector<8x1xf32>
    %126 = arith.divf %124, %125 : vector<8x1xf32>
    %cst_75 = arith.constant 9.99999974E-6 : f32
    %127 = vector.broadcast %cst_75 : f32 to vector<8x1xf32>
    %128 = arith.addf %126, %127 : vector<8x1xf32>
    %129 = math.rsqrt %128 : vector<8x1xf32>
    %130 = vector.broadcast %129 : vector<8x1xf32> to vector<8x32xf32>
    %131 = arith.mulf %121, %130 : vector<8x32xf32>
    %132 = vector.broadcast %0 : vector<1x32xf32> to vector<8x32xf32>
    %133 = arith.mulf %131, %132 : vector<8x32xf32>
    %134 = vector.broadcast %1 : vector<1x32xf32> to vector<8x32xf32>
    %135 = arith.addf %133, %134 : vector<8x32xf32>
    %c0_76 = arith.constant 0 : index
    %c0_77 = arith.constant 0 : index
    %c0_78 = arith.constant 0 : index
    %136 = vector.load %arg10[%c0_76, %c0_77, %c0_78] : memref<1x8x32xf32, #tpu.memory_space<vmem>>, vector<1x8x32xf32>
    %137 = vector.shape_cast %136 : vector<1x8x32xf32> to vector<8x32xf32>
    %138 = vector.shape_cast %135 : vector<8x32xf32> to vector<1x8x32xf32>
    tpu.vector_store %arg10[%c0_76, %c0_77, %c0_78], %138 {strides = array<i32>} : memref<1x8x32xf32, #tpu.memory_space<vmem>>, vector<1x8x32xf32>,
    return
  }
  func.func @transform_0(%arg0: i32, %arg1: i32) -> (i32, i32, i32) {
    %c0_i32 = arith.constant 0 : i32
    %c0_i32_0 = arith.constant 0 : i32
    %c0_i32_1 = arith.constant 0 : i32
    return %arg0, %c0_i32, %c0_i32_0 : i32, i32, i32
  }
  func.func @transform_1(%arg0: i32, %arg1: i32) -> (i32, i32, i32) {
    %c0_i32 = arith.constant 0 : i32
    %c0_i32_0 = arith.constant 0 : i32
    %c0_i32_1 = arith.constant 0 : i32
    return %arg0, %c0_i32, %c0_i32_0 : i32, i32, i32
  }
  func.func @transform_2(%arg0: i32, %arg1: i32) -> (i32, i32) {
    %c0_i32 = arith.constant 0 : i32
    %c0_i32_0 = arith.constant 0 : i32
    %c0_i32_1 = arith.constant 0 : i32
    return %c0_i32, %c0_i32_0 : i32, i32
  }
  func.func @transform_3(%arg0: i32, %arg1: i32) -> (i32, i32) {
    %c0_i32 = arith.constant 0 : i32
    %c0_i32_0 = arith.constant 0 : i32
    %c0_i32_1 = arith.constant 0 : i32
    return %c0_i32, %c0_i32_0 : i32, i32
  }
  func.func @transform_4(%arg0: i32, %arg1: i32) -> (i32, i32) {
    %c0_i32 = arith.constant 0 : i32
    %c0_i32_0 = arith.constant 0 : i32
    %c0_i32_1 = arith.constant 0 : i32
    return %c0_i32, %c0_i32_0 : i32, i32
  }
  func.func @transform_5(%arg0: i32, %arg1: i32) -> (i32, i32) {
    %c0_i32 = arith.constant 0 : i32
    %c0_i32_0 = arith.constant 0 : i32
    %c0_i32_1 = arith.constant 0 : i32
    return %c0_i32, %c0_i32_0 : i32, i32
  }
  func.func @transform_6(%arg0: i32, %arg1: i32) -> (i32, i32) {
    %c0_i32 = arith.constant 0 : i32
    %c0_i32_0 = arith.constant 0 : i32
    %c0_i32_1 = arith.constant 0 : i32
    return %c0_i32, %c0_i32_0 : i32, i32
  }
  func.func @transform_7(%arg0: i32, %arg1: i32) -> (i32, i32) {
    %c0_i32 = arith.constant 0 : i32
    %c0_i32_0 = arith.constant 0 : i32
    %c0_i32_1 = arith.constant 0 : i32
    return %c0_i32, %c0_i32_0 : i32, i32
  }
  func.func @transform_8(%arg0: i32, %arg1: i32) -> (i32, i32, i32) {
    %c0_i32 = arith.constant 0 : i32
    %c0_i32_0 = arith.constant 0 : i32
    return %arg0, %arg1, %c0_i32 : i32, i32, i32
  }
  func.func @transform_9(%arg0: i32, %arg1: i32) -> (i32, i32, i32, i32) {
    %c0_i32 = arith.constant 0 : i32
    %c0_i32_0 = arith.constant 0 : i32
    %c0_i32_1 = arith.constant 0 : i32
    return %arg0, %c0_i32, %arg1, %c0_i32_0 : i32, i32, i32, i32
  }
}

</mosaic_0001>

<llo_original>
// kernel: tpu_custom_call.1
$region0: #{tpu_custom_call.1}
  #allocation0 [shape = 'u32[]', space=smem, size = 0x4, offset = 0x4, fixed_abs, tag = 'smem constant byte address 0x4 - core index']
  #allocation1 [shape = 'u32[144,128]{1,0:T(1,128)}', space=vmem, size = 0x12000, scoped, tag = 'internal scratch']
  #allocation2 [shape = 'f32[16,64]{1,0:T(8,128)}', space=vmem, size = 0x2000, scoped, tag = 'scratch operand']
  #allocation3 [shape = 'f32[8,32]{1,0:T(8,128)}', space=vmem, size = 0x1000, scoped, tag = 'scratch operand']
  %s0 = inlined_call_operand.hbm [shape: f32[2,16,32], index: 0, kind: input, shape index: {}]
  %s1 = inlined_call_operand.vmem [shape: f32[2,1,16], index: 1, kind: input, shape index: {}]
  %s2 = inlined_call_operand.hbm [shape: f32[32,32], index: 2, kind: input, shape index: {}]
  %s3 = inlined_call_operand.hbm [shape: f32[32,64], index: 3, kind: input, shape index: {}]
  %s4 = inlined_call_operand.hbm [shape: f32[32,32], index: 4, kind: input, shape index: {}]
  %s5 = inlined_call_operand.vmem [shape: f32[1,32], index: 5, kind: input, shape index: {}]
  %s6 = inlined_call_operand.vmem [shape: f32[1,32], index: 6, kind: input, shape index: {}]
  %s7 = inlined_call_operand.vmem [shape: f32[1,32], index: 7, kind: input, shape index: {}]
  %s8 = inlined_call_operand.hbm [shape: f32[2,16,32], index: 8, kind: output, shape index: {0}]
  %s9 = inlined_call_operand.hbm [shape: f32[2,4,16,16], index: 9, kind: output, shape index: {1}]
  %10 = xla_tuple %s8, %s9
  %s11 = sld [smem:[#allocation0]]
  $region93: #{tpu_custom_call.1} parent=0
    _
  %s13 = ssub.s32 1, %s11
  %s14 = scalar_select 0, %s13, %s11
  $region1: #{tpu_custom_call.1} parent=0
    #allocation4 [shape = 'u8[16384]{0}', space=vmem, size = 0x4000, scoped, tag = 'input window, operand 0']
    #allocation5 [shape = 's32[2]{0}', space=sflag, size = 0x8, scoped, tag = 'scoped memory for tpu_custom_call.1']
    #allocation6 [shape = 's32[2]{0}', space=sflag, size = 0x8, scoped, tag = 'scoped memory for tpu_custom_call.1']
    #allocation7 [shape = 'u8[16384]{0}', space=vmem, size = 0x4000, scoped, tag = 'input window, operand 2, single buffered']
    #allocation8 [shape = 's32[1]{0}', space=sflag, size = 0x4, scoped, tag = 'scoped memory for tpu_custom_call.1']
    #allocation9 [shape = 'u8[16384]{0}', space=vmem, size = 0x4000, scoped, tag = 'input window, operand 3, single buffered']
    #allocation10 [shape = 'u8[16384]{0}', space=vmem, size = 0x4000, scoped, tag = 'input window, operand 4, single buffered']
    #allocation11 [shape = 's32[1]{0}', space=sflag, size = 0x4, scoped, tag = 'scoped memory for tpu_custom_call.1']
    #allocation12 [shape = 'u8[8192]{0}', space=vmem, size = 0x2000, scoped, tag = 'output window, operand 0']
    #allocation13 [shape = 'u8[32768]{0}', space=vmem, size = 0x8000, scoped, tag = 'output window, operand 1']
    #allocation14 [shape = 's32[2]{0}', space=sflag, size = 0x8, scoped, tag = 'scoped memory for tpu_custom_call.1']
    %15 = vsyncpa [#allocation5], 0
    %s16 = scalar_lea.sflag [#allocation5], 1
    %17 = vsyncpa %s16, 0
    %18 = vsyncpa [#allocation8], 0
    %19 = vsyncpa [#allocation11], 0
    %20 = vsyncpa [#allocation6], 0
    %s21 = scalar_lea.sflag [#allocation6], 1
    %22 = vsyncpa %s21, 0
    %23 = vsyncpa [#allocation14], 0
    %s24 = scalar_lea.sflag [#allocation14], 1
    %25 = vsyncpa %s24, 0
    loop: start=0, step=1, limit=6
    $region2: #{tpu_custom_call.1} parent=1 // loop_pre_header
      _
    $region3: #{tpu_custom_call.1} parent=1 // loop_header
      %s27 = sphi 0, %s31
      %p28 = scmp.ge.s32.totalorder %s27, 6
      %s34 = sphi 0, %s46
      %s35 = sphi 0, %s42
      %s36 = sphi 0, %s34
      %s37 = sphi 0, %s35
      %s38 = sphi 0, %s36
      %s39 = sphi 0, %s37
      %s49 = sphi 0, %s51
      %s52 = sphi 0, %s49
      %s53 = sphi 0, %s52
      %s69 = sphi 0, %s53
      %s75 = sphi 0, %s77
      %s78 = sphi 0, %s75
      %s79 = sphi 0, %s78
      %s95 = sphi 0, %s79
      %s99 = sphi 0, %s99
      %s101 = sphi 0, %s99
      %s102 = sphi 0, %s101
      %s116 = sphi 0, %s102
      %s120 = sphi 0, %s120
      %s122 = sphi 0, %s120
      %s123 = sphi 0, %s122
      %s137 = sphi 0, %s123
      %s141 = sphi 0, %s141
      %s143 = sphi 0, %s141
      %s144 = sphi 0, %s143
      %s158 = sphi 0, %s144
      %s162 = sphi 0, %s162
      %s164 = sphi 0, %s162
      %s165 = sphi 0, %s164
      %s179 = sphi 0, %s165
      %s183 = sphi 0, %s183
      %s185 = sphi 0, %s183
      %s186 = sphi 0, %s185
      %s200 = sphi 0, %s186
      %s204 = sphi 0, %s204
      %s206 = sphi 0, %s204
      %s207 = sphi 0, %s206
      %s221 = sphi 0, %s207
      %s229 = sphi 0, %s231
      %s232 = sphi 0, %s229
      %s233 = sphi 0, %s232
      %s249 = sphi 0, %s233
      %s257 = sphi 0, %s259
      %s260 = sphi 0, %s257
      %s261 = sphi 0, %s260
      %s277 = sphi 0, %s261
    $region4: #{tpu_custom_call.1} parent=1 // loop_header_branch
      %30 = sbr.rel (%p28) target = $region8
    $region5: #{tpu_custom_call.1} parent=1 // loop_body
      %s32 = ssub.s32 %s27, 1
      %s33 = ssub.s32 %s27, 2
      %s40 = sadd.s32 1, %s35
      %p41 = scmp.ge.s32.totalorder %s40, 2
      %s42 = scalar_select %p41, 0, %s40
      %s43 = sadd.s32 1, %s34
      %s44 = scalar_select %p41, %s43, %s34
      %p45 = scmp.ge.s32.totalorder %s44, 2
      %s46 = scalar_select %p45, 0, %s44
      %s47 = ssub.s32 %s34, %s46
      %p48 = scmp.eq.s32.totalorder %s47, 0
      %s50 = sadd.s32 %s49, 1
      %s51 = scalar_select %p48, %s49, %s50
      %p54 = pneg %p48
      %p55 = scmp.eq.s32.totalorder %s27, 3
      %p56 = por %p54, %p55
      %p57 = scmp.ne.s32.totalorder %s49, %s52
      %p58 = scmp.eq.s32.totalorder %s27, 0
      %p59 = por %p57, %p58
      %p60 = scmp.ne.s32.totalorder %s49, %s52
      %p61 = scmp.eq.s32.totalorder %s32, 3
      %p62 = por %p60, %p61
      %p63 = scmp.ne.s32.totalorder %s52, %s53
      %p64 = scmp.eq.s32.totalorder %s32, 0
      %p65 = por %p63, %p64
      %p66 = scmp.ne.s32.totalorder %s52, %s53
      %p67 = scmp.eq.s32.totalorder %s33, 3
      %p68 = por %p66, %p67
      %p70 = scmp.ne.s32.totalorder %s53, %s69
      %p71 = scmp.eq.s32.totalorder %s33, 0
      %p72 = por %p70, %p71
      %s73 = ssub.s32 %s34, %s46
      %p74 = scmp.eq.s32.totalorder %s73, 0
      %s76 = sadd.s32 %s75, 1
      %s77 = scalar_select %p74, %s75, %s76
      %p80 = pneg %p74
      %p81 = scmp.eq.s32.totalorder %s27, 3
      %p82 = por %p80, %p81
      %p83 = scmp.ne.s32.totalorder %s75, %s78
      %p84 = scmp.eq.s32.totalorder %s27, 0
      %p85 = por %p83, %p84
      %p86 = scmp.ne.s32.totalorder %s75, %s78
      %p87 = scmp.eq.s32.totalorder %s32, 3
      %p88 = por %p86, %p87
      %p89 = scmp.ne.s32.totalorder %s78, %s79
      %p90 = scmp.eq.s32.totalorder %s32, 0
      %p91 = por %p89, %p90
      %p92 = scmp.ne.s32.totalorder %s78, %s79
      %p93 = scmp.eq.s32.totalorder %s33, 3
      %p94 = por %p92, %p93
      %p96 = scmp.ne.s32.totalorder %s79, %s95
      %p97 = scmp.eq.s32.totalorder %s33, 0
      %p98 = por %p96, %p97
      %s100 = sadd.s32 %s99, 1
      %p103 = scmp.eq.s32.totalorder %s27, 3
      %p104 = scmp.ne.s32.totalorder %s99, %s101
      %p105 = scmp.eq.s32.totalorder %s27, 0
      %p106 = por %p104, %p105
      %p107 = scmp.ne.s32.totalorder %s99, %s101
      %p108 = scmp.eq.s32.totalorder %s32, 3
      %p109 = por %p107, %p108
      %p110 = scmp.ne.s32.totalorder %s101, %s102
      %p111 = scmp.eq.s32.totalorder %s32, 0
      %p112 = por %p110, %p111
      %p113 = scmp.ne.s32.totalorder %s101, %s102
      %p114 = scmp.eq.s32.totalorder %s33, 3
      %p115 = por %p113, %p114
      %p117 = scmp.ne.s32.totalorder %s102, %s116
      %p118 = scmp.eq.s32.totalorder %s33, 0
      %p119 = por %p117, %p118
      %s121 = sadd.s32 %s120, 1
      %p124 = scmp.eq.s32.totalorder %s27, 3
      %p125 = scmp.ne.s32.totalorder %s120, %s122
      %p126 = scmp.eq.s32.totalorder %s27, 0
      %p127 = por %p125, %p126
      %p128 = scmp.ne.s32.totalorder %s120, %s122
      %p129 = scmp.eq.s32.totalorder %s32, 3
      %p130 = por %p128, %p129
      %p131 = scmp.ne.s32.totalorder %s122, %s123
      %p132 = scmp.eq.s32.totalorder %s32, 0
      %p133 = por %p131, %p132
      %p134 = scmp.ne.s32.totalorder %s122, %s123
      %p135 = scmp.eq.s32.totalorder %s33, 3
      %p136 = por %p134, %p135
      %p138 = scmp.ne.s32.totalorder %s123, %s137
      %p139 = scmp.eq.s32.totalorder %s33, 0
      %p140 = por %p138, %p139
      %s142 = sadd.s32 %s141, 1
      %p145 = scmp.eq.s32.totalorder %s27, 3
      %p146 = scmp.ne.s32.totalorder %s141, %s143
      %p147 = scmp.eq.s32.totalorder %s27, 0
      %p148 = por %p146, %p147
      %p149 = scmp.ne.s32.totalorder %s141, %s143
      %p150 = scmp.eq.s32.totalorder %s32, 3
      %p151 = por %p149, %p150
      %p152 = scmp.ne.s32.totalorder %s143, %s144
      %p153 = scmp.eq.s32.totalorder %s32, 0
      %p154 = por %p152, %p153
      %p155 = scmp.ne.s32.totalorder %s143, %s144
      %p156 = scmp.eq.s32.totalorder %s33, 3
      %p157 = por %p155, %p156
      %p159 = scmp.ne.s32.totalorder %s144, %s158
      %p160 = scmp.eq.s32.totalorder %s33, 0
      %p161 = por %p159, %p160
      %s163 = sadd.s32 %s162, 1
      %p166 = scmp.eq.s32.totalorder %s27, 3
      %p167 = scmp.ne.s32.totalorder %s162, %s164
      %p168 = scmp.eq.s32.totalorder %s27, 0
      %p169 = por %p167, %p168
      %p170 = scmp.ne.s32.totalorder %s162, %s164
      %p171 = scmp.eq.s32.totalorder %s32, 3
      %p172 = por %p170, %p171
      %p173 = scmp.ne.s32.totalorder %s164, %s165
      %p174 = scmp.eq.s32.totalorder %s32, 0
      %p175 = por %p173, %p174
      %p176 = scmp.ne.s32.totalorder %s164, %s165
      %p177 = scmp.eq.s32.totalorder %s33, 3
      %p178 = por %p176, %p177
      %p180 = scmp.ne.s32.totalorder %s165, %s179
      %p181 = scmp.eq.s32.totalorder %s33, 0
      %p182 = por %p180, %p181
      %s184 = sadd.s32 %s183, 1
      %p187 = scmp.eq.s32.totalorder %s27, 3
      %p188 = scmp.ne.s32.totalorder %s183, %s185
      %p189 = scmp.eq.s32.totalorder %s27, 0
      %p190 = por %p188, %p189
      %p191 = scmp.ne.s32.totalorder %s183, %s185
      %p192 = scmp.eq.s32.totalorder %s32, 3
      %p193 = por %p191, %p192
      %p194 = scmp.ne.s32.totalorder %s185, %s186
      %p195 = scmp.eq.s32.totalorder %s32, 0
      %p196 = por %p194, %p195
      %p197 = scmp.ne.s32.totalorder %s185, %s186
      %p198 = scmp.eq.s32.totalorder %s33, 3
      %p199 = por %p197, %p198
      %p201 = scmp.ne.s32.totalorder %s186, %s200
      %p202 = scmp.eq.s32.totalorder %s33, 0
      %p203 = por %p201, %p202
      %s205 = sadd.s32 %s204, 1
      %p208 = scmp.eq.s32.totalorder %s27, 3
      %p209 = scmp.ne.s32.totalorder %s204, %s206
      %p210 = scmp.eq.s32.totalorder %s27, 0
      %p211 = por %p209, %p210
      %p212 = scmp.ne.s32.totalorder %s204, %s206
      %p213 = scmp.eq.s32.totalorder %s32, 3
      %p214 = por %p212, %p213
      %p215 = scmp.ne.s32.totalorder %s206, %s207
      %p216 = scmp.eq.s32.totalorder %s32, 0
      %p217 = por %p215, %p216
      %p218 = scmp.ne.s32.totalorder %s206, %s207
      %p219 = scmp.eq.s32.totalorder %s33, 3
      %p220 = por %p218, %p219
      %p222 = scmp.ne.s32.totalorder %s207, %s221
      %p223 = scmp.eq.s32.totalorder %s33, 0
      %p224 = por %p222, %p223
      %s225 = ssub.s32 %s34, %s46
      %s226 = ssub.s32 %s35, %s42
      %s227 = sor.u32 %s225, %s226
      %p228 = scmp.eq.s32.totalorder %s227, 0
      %s230 = sadd.s32 %s229, 1
      %s231 = scalar_select %p228, %s229, %s230
      %p234 = pneg %p228
      %p235 = scmp.eq.s32.totalorder %s27, 3
      %p236 = por %p234, %p235
      %p237 = scmp.ne.s32.totalorder %s229, %s232
      %p238 = scmp.eq.s32.totalorder %s27, 0
      %p239 = por %p237, %p238
      %p240 = scmp.ne.s32.totalorder %s229, %s232
      %p241 = scmp.eq.s32.totalorder %s32, 3
      %p242 = por %p240, %p241
      %p243 = scmp.ne.s32.totalorder %s232, %s233
      %p244 = scmp.eq.s32.totalorder %s32, 0
      %p245 = por %p243, %p244
      %p246 = scmp.ne.s32.totalorder %s232, %s233
      %p247 = scmp.eq.s32.totalorder %s33, 3
      %p248 = por %p246, %p247
      %p250 = scmp.ne.s32.totalorder %s233, %s249
      %p251 = scmp.eq.s32.totalorder %s33, 0
      %p252 = por %p250, %p251
      %s253 = ssub.s32 %s34, %s46
      %s254 = ssub.s32 %s35, %s42
      %s255 = sor.u32 %s253, %s254
      %p256 = scmp.eq.s32.totalorder %s255, 0
      %s258 = sadd.s32 %s257, 1
      %s259 = scalar_select %p256, %s257, %s258
      %p262 = pneg %p256
      %p263 = scmp.eq.s32.totalorder %s27, 3
      %p264 = por %p262, %p263
      %p265 = scmp.ne.s32.totalorder %s257, %s260
      %p266 = scmp.eq.s32.totalorder %s27, 0
      %p267 = por %p265, %p266
      %p268 = scmp.ne.s32.totalorder %s257, %s260
      %p269 = scmp.eq.s32.totalorder %s32, 3
      %p270 = por %p268, %p269
      %p271 = scmp.ne.s32.totalorder %s260, %s261
      %p272 = scmp.eq.s32.totalorder %s32, 0
      %p273 = por %p271, %p272
      %p274 = scmp.ne.s32.totalorder %s260, %s261
      %p275 = scmp.eq.s32.totalorder %s33, 3
      %p276 = por %p274, %p275
      %p278 = scmp.ne.s32.totalorder %s261, %s277
      %p279 = scmp.eq.s32.totalorder %s33, 0
      %p280 = por %p278, %p279
      %p281 = scmp.le.s32.totalorder 1, %s27
      %p282 = scmp.lt.s32.totalorder %s27, 5
      %p283 = pnand %p281, %p282
      %p284 = pneg %p283
      // Predicated region
      $region9: #{tpu_custom_call.1} parent=5 // pred_check
        _
      $region10: #{tpu_custom_call.1} parent=5 // pred_check_branch
        %286 = sbr.rel (%p283) target = $region12
      $region11: #{tpu_custom_call.1} parent=5 // pred_region
        %s287 = ssub.s32 %s27, 1
        // Predicated region
        $region13: #{tpu_custom_call.1} parent=11 // pred_check
          %p288 = pneg %p112
        $region14: #{tpu_custom_call.1} parent=11 // pred_check_branch
          %290 = sbr.rel (%p288) target = $region16
        $region15: #{tpu_custom_call.1} parent=11 // pred_region
          %s292 = ssub.s32 512, 512
          %293 = vsyncadd [#allocation8], %s292
          %s294 = sshll.u32 [#allocation7], 4
          %s295 = int_to_ptr.vmem [resolvable:$true] %s294
          %300 = dma.hbm_to_vmem [thread:$0]  %s2, 512, %s295, [#allocation8], 128, 128, 8
        $region16: #{tpu_custom_call.1} parent=11 // pred_fallthru
          _
        // Predicated region
        $region17: #{tpu_custom_call.1} parent=11 // pred_check
          %p301 = pneg %p133
        $region18: #{tpu_custom_call.1} parent=11 // pred_check_branch
          %303 = sbr.rel (%p301) target = $region20
        $region19: #{tpu_custom_call.1} parent=11 // pred_region
          %s305 = ssub.s32 512, 512
          %306 = vsyncadd [#allocation8], %s305
          %s307 = sshll.u32 [#allocation9], 4
          %s308 = int_to_ptr.vmem [resolvable:$true] %s307
          %313 = dma.hbm_to_vmem [thread:$0]  %s3, 512, %s308, [#allocation8], 128, 128, 8
        $region20: #{tpu_custom_call.1} parent=11 // pred_fallthru
          _
        // Predicated region
        $region21: #{tpu_custom_call.1} parent=11 // pred_check
          %p314 = pneg %p154
        $region22: #{tpu_custom_call.1} parent=11 // pred_check_branch
          %316 = sbr.rel (%p314) target = $region24
        $region23: #{tpu_custom_call.1} parent=11 // pred_region
          %s318 = ssub.s32 512, 512
          %319 = vsyncadd [#allocation11], %s318
          %s320 = sshll.u32 [#allocation10], 4
          %s321 = int_to_ptr.vmem [resolvable:$true] %s320
          %326 = dma.hbm_to_vmem [thread:$0]  %s4, 512, %s321, [#allocation11], 128, 128, 8
        $region24: #{tpu_custom_call.1} parent=11 // pred_fallthru
          _
        // Predicated region
        $region25: #{tpu_custom_call.1} parent=11 // pred_check
          %p327 = pneg %p175
        $region26: #{tpu_custom_call.1} parent=11 // pred_check_branch
          %329 = sbr.rel (%p327) target = $region28
        $region27: #{tpu_custom_call.1} parent=11 // pred_region
          _
        $region28: #{tpu_custom_call.1} parent=11 // pred_fallthru
          _
        // Predicated region
        $region29: #{tpu_custom_call.1} parent=11 // pred_check
          %p330 = pneg %p196
        $region30: #{tpu_custom_call.1} parent=11 // pred_check_branch
          %332 = sbr.rel (%p330) target = $region32
        $region31: #{tpu_custom_call.1} parent=11 // pred_region
          _
        $region32: #{tpu_custom_call.1} parent=11 // pred_fallthru
          _
        // Predicated region
        $region33: #{tpu_custom_call.1} parent=11 // pred_check
          %p333 = pneg %p217
        $region34: #{tpu_custom_call.1} parent=11 // pred_check_branch
          %335 = sbr.rel (%p333) target = $region36
        $region35: #{tpu_custom_call.1} parent=11 // pred_region
          _
        $region36: #{tpu_custom_call.1} parent=11 // pred_fallthru
          _
      $region12: #{tpu_custom_call.1} parent=5 // pred_fallthru
        _
      %p336 = scmp.lt.s32.totalorder %s27, 4
      // Predicated region
      $region37: #{tpu_custom_call.1} parent=5 // pred_check
        %p337 = pneg %p336
      $region38: #{tpu_custom_call.1} parent=5 // pred_check_branch
        %339 = sbr.rel (%p337) target = $region40
      $region39: #{tpu_custom_call.1} parent=5 // pred_region
        // Predicated region
        $region41: #{tpu_custom_call.1} parent=39 // pred_check
          %p340 = pneg %p59
        $region42: #{tpu_custom_call.1} parent=39 // pred_check_branch
          %342 = sbr.rel (%p340) target = $region44
        $region43: #{tpu_custom_call.1} parent=39 // pred_region
          %s343 = sand.u32 %s49, 1
          %s344 = scalar_lea.sflag [#allocation5], %s343
          %s345 = sand.u32 %s49, 1
          %s346 = smul.addr %s345, 16
          %s347 = scalar_lea.vmem [#allocation4], %s346
          %s349 = ssub.s32 256, 256
          %350 = vsyncadd %s344, %s349
          %s351 = smul.addr %s34, 2
          %s352 = smul.addr %s351, 128
          %s353 = scalar_lea.hbm %s0, %s352
          %s354 = sshll.u32 %s347, 4
          %s355 = int_to_ptr.vmem [resolvable:$true] %s354
          %360 = dma.hbm_to_vmem [thread:$0]  %s353, 256, %s355, %s344, 128, 128, 8
        $region44: #{tpu_custom_call.1} parent=39 // pred_fallthru
          _
        // Predicated region
        $region45: #{tpu_custom_call.1} parent=39 // pred_check
          %p361 = pneg %p85
        $region46: #{tpu_custom_call.1} parent=39 // pred_check_branch
          %363 = sbr.rel (%p361) target = $region48
        $region47: #{tpu_custom_call.1} parent=39 // pred_region
          %p364 = scmp.lt.s32.totalorder %s34, 1
          %s365 = scalar_select %p364, %s34, 1
          %s366 = scalar_lea.vmem %s1, %s365
        $region48: #{tpu_custom_call.1} parent=39 // pred_fallthru
          _
      $region40: #{tpu_custom_call.1} parent=5 // pred_fallthru
        _
      %p367 = scmp.le.s32.totalorder 1, %s27
      %p368 = scmp.lt.s32.totalorder %s27, 5
      %p369 = pnand %p367, %p368
      %p370 = pneg %p369
      // Predicated region
      $region49: #{tpu_custom_call.1} parent=5 // pred_check
        _
      $region50: #{tpu_custom_call.1} parent=5 // pred_check_branch
        %372 = sbr.rel (%p369) target = $region52
      $region51: #{tpu_custom_call.1} parent=5 // pred_region
        %s373 = ssub.s32 %s27, 1
        %s374 = sand.u32 %s52, 1
        %s375 = scalar_lea.sflag [#allocation5], %s374
        %s376 = sand.u32 %s52, 1
        %s377 = smul.addr %s376, 16
        %s378 = scalar_lea.vmem [#allocation4], %s377
        // Predicated region
        $region53: #{tpu_custom_call.1} parent=51 // pred_check
          %p379 = pneg %p65
        $region54: #{tpu_custom_call.1} parent=51 // pred_check_branch
          %381 = sbr.rel (%p379) target = $region56
        $region55: #{tpu_custom_call.1} parent=51 // pred_region
          %382 = dma.done %s375, 256
        $region56: #{tpu_custom_call.1} parent=51 // pred_fallthru
          _
        // Predicated region
        $region57: #{tpu_custom_call.1} parent=51 // pred_check
          %p383 = pneg %p112
        $region58: #{tpu_custom_call.1} parent=51 // pred_check_branch
          %385 = sbr.rel (%p383) target = $region60
        $region59: #{tpu_custom_call.1} parent=51 // pred_region
          %386 = dma.done [#allocation8], 512
        $region60: #{tpu_custom_call.1} parent=51 // pred_fallthru
          _
        // Predicated region
        $region61: #{tpu_custom_call.1} parent=51 // pred_check
          %p387 = pneg %p133
        $region62: #{tpu_custom_call.1} parent=51 // pred_check_branch
          %389 = sbr.rel (%p387) target = $region64
        $region63: #{tpu_custom_call.1} parent=51 // pred_region
          %390 = dma.done [#allocation8], 512
        $region64: #{tpu_custom_call.1} parent=51 // pred_fallthru
          _
        // Predicated region
        $region65: #{tpu_custom_call.1} parent=51 // pred_check
          %p391 = pneg %p154
        $region66: #{tpu_custom_call.1} parent=51 // pred_check_branch
          %393 = sbr.rel (%p391) target = $region68
        $region67: #{tpu_custom_call.1} parent=51 // pred_region
          %394 = dma.done [#allocation11], 512
        $region68: #{tpu_custom_call.1} parent=51 // pred_fallthru
          _
        %s395 = sand.u32 %s52, 1
        %s396 = scalar_lea.sflag [#allocation5], %s395
        %s397 = sand.u32 %s52, 1
        %s398 = smul.addr %s397, 16
        %s399 = scalar_lea.vmem [#allocation4], %s398
        %p400 = pneg %p65
        %p401 = pneg %p62
        %p402 = scmp.lt.s32.totalorder %s36, 1
        %s403 = scalar_select %p402, %s36, 1
        %s404 = scalar_lea.vmem %s1, %s403
        %p405 = pneg %p91
        %p406 = pneg %p88
        %p407 = pneg %p112
        %p408 = pneg %p109
        %p409 = pneg %p133
        %p410 = pneg %p130
        %p411 = pneg %p154
        %p412 = pneg %p151
        %p413 = pneg %p175
        %p414 = pneg %p172
        %p415 = pneg %p196
        %p416 = pneg %p193
        %p417 = pneg %p217
        %p418 = pneg %p214
        %p419 = pneg %p245
        %p420 = pneg %p242
        %s421 = sand.u32 %s232, 1
        %s422 = scalar_lea.sflag [#allocation6], %s421
        %s423 = sand.u32 %s232, 1
        %s424 = smul.addr %s423, 8
        %s425 = scalar_lea.vmem [#allocation12], %s424
        %p426 = pneg %p273
        %p427 = pneg %p270
        %s428 = sand.u32 %s260, 1
        %s429 = scalar_lea.sflag [#allocation14], %s428
        %s430 = sand.u32 %s260, 1
        %s431 = smul.addr %s430, 32
        %s432 = scalar_lea.vmem [#allocation13], %s431
        %p433 = scmp.lt.s32.totalorder %s36, 1
        %s434 = scalar_select %p433, %s36, 1
        %s435 = scalar_lea.vmem %s1, %s434
        %v436 = vld [vmem:[%s6] sm:$0x1]
        %v437 = vld [vmem:[%s7] sm:$0x1]
        %p438 = scmp.eq.s32.totalorder %s37, 0
        // Predicated region
        $region69: #{tpu_custom_call.1} parent=51 // pred_check
          %p439 = pneg %p438
        $region70: #{tpu_custom_call.1} parent=51 // pred_check_branch
          %441 = sbr.rel (%p439) target = $region72
        $region71: #{tpu_custom_call.1} parent=51 // pred_region
          %v442 = vld [vmem:[%s378] sm:$0xff]
          %v443 = vld [vmem:[%s378 + $0x8] sm:$0xff]
          %v444 = vld [vmem:[#allocation9] sm:$0xff]
          %v445 = vld [vmem:[#allocation9 + $0x8] sm:$0xff]
          %v446 = vld [vmem:[#allocation9 + $0x10] sm:$0xff]
          %v447 = vld [vmem:[#allocation9 + $0x18] sm:$0xff]
          %vm448 = vcmask 261120
          %v450 = vsel %vm448, %v442, 0
          %v453 = vsel %vm448, %v443, 0
          %455 = vmatprep.subr.mxu0 0.0
          %456 = vmatpush1.msra.mxu0 %v444
          %457 = vmatprep.subr.mxu0 0.0
          %458 = vmatpush1.msra.mxu0 %v445
          %459 = vmatprep.subr.mxu0 0.0
          %460 = vmatpush1.msra.mxu0 %v446
          %461 = vmatprep.subr.mxu0 0.0
          %462 = vmatpush1.msra.mxu0 %v447
          %463 = vmatprep.subr.mxu0 0.0
          %464 = vmatpush1.msra.mxu0 0.0
          %465 = vmatprep.subr.mxu0 0.0
          %466 = vmatpush1.msra.mxu0 0.0
          %467 = vmatprep.subr.mxu0 0.0
          %468 = vmatpush1.msra.mxu0 0.0
          %469 = vmatprep.subr.mxu0 0.0
          %470 = vmatpush1.msra.mxu0 0.0
          %471 = vmatprep.subr.mxu0 0.0
          %472 = vmatpush1.msra.mxu0 0.0
          %473 = vmatprep.subr.mxu0 0.0
          %474 = vmatpush1.msra.mxu0 0.0
          %475 = vmatprep.subr.mxu0 0.0
          %476 = vmatpush1.msra.mxu0 0.0
          %477 = vmatprep.subr.mxu0 0.0
          %478 = vmatpush1.msra.mxu0 0.0
          %479 = vmatprep.subr.mxu0 0.0
          %480 = vmatpush1.msra.mxu0 0.0
          %481 = vmatprep.subr.mxu0 0.0
          %482 = vmatpush1.msra.mxu0 0.0
          %483 = vmatprep.subr.mxu0 0.0
          %484 = vmatpush1.msra.mxu0 0.0
          %485 = vmatprep.subr.mxu0 0.0
          %486 = vmatpush1.msra.mxu0 0.0
          %487 = vmatprep.subr.mxu0 0.0
          %488 = vmatpush1.msra.mxu0 0.0
          %489 = vmatprep.subr.mxu0 0.0
          %490 = vmatpush1.msra.mxu0 0.0
          %491 = vmatprep.subr.mxu0 0.0
          %492 = vmatpush1.msra.mxu0 0.0
          %493 = vmatprep.subr.mxu0 0.0
          %494 = vmatpush1.msra.mxu0 0.0
          %495 = vmatprep.subr.mxu0 0.0
          %496 = vmatpush1.msra.mxu0 0.0
          %497 = vmatprep.subr.mxu0 0.0
          %498 = vmatpush1.msra.mxu0 0.0
          %499 = vmatprep.subr.mxu0 0.0
          %500 = vmatpush1.msra.mxu0 0.0
          %501 = vmatprep.subr.mxu0 0.0
          %502 = vmatpush1.msra.mxu0 0.0
          %503 = vmatprep.subr.mxu0 0.0
          %504 = vmatpush1.msra.mxu0 0.0
          %505 = vmatprep.subr.mxu0 0.0
          %506 = vmatpush1.msra.mxu0 0.0
          %507 = vmatprep.subr.mxu0 0.0
          %508 = vmatpush1.msra.mxu0 0.0
          %509 = vmatprep.subr.mxu0 0.0
          %510 = vmatpush1.msra.mxu0 0.0
          %511 = vmatprep.subr.mxu0 0.0
          %512 = vmatpush1.msra.mxu0 0.0
          %513 = vmatprep.subr.mxu0 0.0
          %514 = vmatpush1.msra.mxu0 0.0
          %515 = vmatprep.subr.mxu0 0.0
          %516 = vmatpush1.msra.mxu0 0.0
          %517 = vmatprep.subr.mxu0 0.0
          %518 = vmatpush1.msra.mxu0 0.0
          %519 = vmatprep.mubr.f32.mxu0 0.0
          %520 = vmatmul.mubr.f32.gmra.mrb[0].mxu0 %v450
          %v521 = vpop.f32.mrb[0].mxu0
          %v522 = vadd.f32 0.0, %v521
          %v523 = vpop.f32.mrb[0].mxu0
          %524 = vmatprep.mubr.f32.mxu0 0.0
          %525 = vmatmul.mubr.f32.gmra.mrb[0].mxu0 %v453
          %v526 = vpop.f32.mrb[0].mxu0
          %v527 = vadd.f32 0.0, %v526
          %v528 = vpop.f32.mrb[0].mxu0
          %529 = vdwg.mxu0
          %vm530 = vcmask 523264
          %531 = vst.msk [vmem:[#allocation2] sm:$0xff] %vm530, %v522
          %532 = vst.msk [vmem:[#allocation2 + $0x8] sm:$0xff] %vm530, %v527
        $region72: #{tpu_custom_call.1} parent=51 // pred_fallthru
          _
        %s533 = smul.u32 %s37, 8
        %s534 = scalar_lea.vmem %s378, %s533 [#allocation4]
        %v535 = vld [vmem:[%s534] sm:$0xff]
        %v536 = vld [vmem:[#allocation7] sm:$0xff]
        %v537 = vld [vmem:[#allocation7 + $0x8] sm:$0xff]
        %v538 = vld [vmem:[#allocation7 + $0x10] sm:$0xff]
        %v539 = vld [vmem:[#allocation7 + $0x18] sm:$0xff]
        %vm540 = vcmask 261120
        %v542 = vsel %vm540, %v535, 0
        %544 = vmatprep.subr.mxu0 0.0
        %545 = vmatpush1.msra.mxu0 %v536
        %546 = vmatprep.subr.mxu0 0.0
        %547 = vmatpush1.msra.mxu0 %v537
        %548 = vmatprep.subr.mxu0 0.0
        %549 = vmatpush1.msra.mxu0 %v538
        %550 = vmatprep.subr.mxu0 0.0
        %551 = vmatpush1.msra.mxu0 %v539
        %552 = vmatprep.subr.mxu0 0.0
        %553 = vmatpush1.msra.mxu0 0.0
        %554 = vmatprep.subr.mxu0 0.0
        %555 = vmatpush1.msra.mxu0 0.0
        %556 = vmatprep.subr.mxu0 0.0
        %557 = vmatpush1.msra.mxu0 0.0
        %558 = vmatprep.subr.mxu0 0.0
        %559 = vmatpush1.msra.mxu0 0.0
        %560 = vmatprep.subr.mxu0 0.0
        %561 = vmatpush1.msra.mxu0 0.0
        %562 = vmatprep.subr.mxu0 0.0
        %563 = vmatpush1.msra.mxu0 0.0
        %564 = vmatprep.subr.mxu0 0.0
        %565 = vmatpush1.msra.mxu0 0.0
        %566 = vmatprep.subr.mxu0 0.0
        %567 = vmatpush1.msra.mxu0 0.0
        %568 = vmatprep.subr.mxu0 0.0
        %569 = vmatpush1.msra.mxu0 0.0
        %570 = vmatprep.subr.mxu0 0.0
        %571 = vmatpush1.msra.mxu0 0.0
        %572 = vmatprep.subr.mxu0 0.0
        %573 = vmatpush1.msra.mxu0 0.0
        %574 = vmatprep.subr.mxu0 0.0
        %575 = vmatpush1.msra.mxu0 0.0
        %576 = vmatprep.subr.mxu0 0.0
        %577 = vmatpush1.msra.mxu0 0.0
        %578 = vmatprep.subr.mxu0 0.0
        %579 = vmatpush1.msra.mxu0 0.0
        %580 = vmatprep.subr.mxu0 0.0
        %581 = vmatpush1.msra.mxu0 0.0
        %582 = vmatprep.subr.mxu0 0.0
        %583 = vmatpush1.msra.mxu0 0.0
        %584 = vmatprep.subr.mxu0 0.0
        %585 = vmatpush1.msra.mxu0 0.0
        %586 = vmatprep.subr.mxu0 0.0
        %587 = vmatpush1.msra.mxu0 0.0
        %588 = vmatprep.subr.mxu0 0.0
        %589 = vmatpush1.msra.mxu0 0.0
        %590 = vmatprep.subr.mxu0 0.0
        %591 = vmatpush1.msra.mxu0 0.0
        %592 = vmatprep.subr.mxu0 0.0
        %593 = vmatpush1.msra.mxu0 0.0
        %594 = vmatprep.subr.mxu0 0.0
        %595 = vmatpush1.msra.mxu0 0.0
        %596 = vmatprep.subr.mxu0 0.0
        %597 = vmatpush1.msra.mxu0 0.0
        %598 = vmatprep.subr.mxu0 0.0
        %599 = vmatpush1.msra.mxu0 0.0
        %600 = vmatprep.subr.mxu0 0.0
        %601 = vmatpush1.msra.mxu0 0.0
        %602 = vmatprep.subr.mxu0 0.0
        %603 = vmatpush1.msra.mxu0 0.0
        %604 = vmatprep.subr.mxu0 0.0
        %605 = vmatpush1.msra.mxu0 0.0
        %606 = vmatprep.subr.mxu0 0.0
        %607 = vmatpush1.msra.mxu0 0.0
        %608 = vmatprep.mubr.f32.mxu0 0.0
        %609 = vmatmul.mubr.f32.gmra.mrb[0].mxu0 %v542
        %v610 = vpop.f32.mrb[0].mxu0
        %v611 = vadd.f32 0.0, %v610
        %v612 = vpop.f32.mrb[0].mxu0
        %613 = vdwg.mxu0
        %v614 = vld [vmem:[%s435] sm:$0x1]
        %vm615 = vcmp.eq.f32.partialorder %v614, 0.0
        %v616 = vsel %vm615, -1e+10, 0.0
        %v618 = vlaneseq
        %v619 = vshrl.u32 %v618, 7
        %v620 = vsub.s32 0, %v619
        %v621 = vrot.slane %v616, %v620
        %v623 = vld [vmem:[#allocation2] sm:$0xff]
        %v624 = vld [vmem:[#allocation2 + $0x8] sm:$0xff]
        %vm625 = vcmask 64512
        %v627 = vsel %vm625, %v611, 0
        %v630 = vsel %vm625, %v623, 0
        %v633 = vsel %vm625, %v624, 0
        %635 = vmatprep.subr.mxu0 0.0
        %636 = vmatpush1.xpose.msra.mxu0 %v630
        %637 = vmatprep.subr.mxu0 0.0
        %638 = vmatpush1.xpose.msra.mxu0 %v633
        %639 = vmatprep.subr.mxu0 0.0
        %640 = vmatpush1.xpose.msra.mxu0 0.0
        %641 = vmatprep.subr.mxu0 0.0
        %642 = vmatpush1.xpose.msra.mxu0 0.0
        %643 = vmatprep.subr.mxu0 0.0
        %644 = vmatpush1.xpose.msra.mxu0 0.0
        %645 = vmatprep.subr.mxu0 0.0
        %646 = vmatpush1.xpose.msra.mxu0 0.0
        %647 = vmatprep.subr.mxu0 0.0
        %648 = vmatpush1.xpose.msra.mxu0 0.0
        %649 = vmatprep.subr.mxu0 0.0
        %650 = vmatpush1.xpose.msra.mxu0 0.0
        %651 = vmatprep.subr.mxu0 0.0
        %652 = vmatpush1.xpose.msra.mxu0 0.0
        %653 = vmatprep.subr.mxu0 0.0
        %654 = vmatpush1.xpose.msra.mxu0 0.0
        %655 = vmatprep.subr.mxu0 0.0
        %656 = vmatpush1.xpose.msra.mxu0 0.0
        %657 = vmatprep.subr.mxu0 0.0
        %658 = vmatpush1.xpose.msra.mxu0 0.0
        %659 = vmatprep.subr.mxu0 0.0
        %660 = vmatpush1.xpose.msra.mxu0 0.0
        %661 = vmatprep.subr.mxu0 0.0
        %662 = vmatpush1.xpose.msra.mxu0 0.0
        %663 = vmatprep.subr.mxu0 0.0
        %664 = vmatpush1.xpose.msra.mxu0 0.0
        %665 = vmatprep.subr.mxu0 0.0
        %666 = vmatpush1.xpose.msra.mxu0 0.0
        %667 = vmatprep.subr.mxu0 0.0
        %668 = vmatpush1.xpose.msra.mxu0 0.0
        %669 = vmatprep.subr.mxu0 0.0
        %670 = vmatpush1.xpose.msra.mxu0 0.0
        %671 = vmatprep.subr.mxu0 0.0
        %672 = vmatpush1.xpose.msra.mxu0 0.0
        %673 = vmatprep.subr.mxu0 0.0
        %674 = vmatpush1.xpose.msra.mxu0 0.0
        %675 = vmatprep.subr.mxu0 0.0
        %676 = vmatpush1.xpose.msra.mxu0 0.0
        %677 = vmatprep.subr.mxu0 0.0
        %678 = vmatpush1.xpose.msra.mxu0 0.0
        %679 = vmatprep.subr.mxu0 0.0
        %680 = vmatpush1.xpose.msra.mxu0 0.0
        %681 = vmatprep.subr.mxu0 0.0
        %682 = vmatpush1.xpose.msra.mxu0 0.0
        %683 = vmatprep.subr.mxu0 0.0
        %684 = vmatpush1.xpose.msra.mxu0 0.0
        %685 = vmatprep.subr.mxu0 0.0
        %686 = vmatpush1.xpose.msra.mxu0 0.0
        %687 = vmatprep.subr.mxu0 0.0
        %688 = vmatpush1.xpose.msra.mxu0 0.0
        %689 = vmatprep.subr.mxu0 0.0
        %690 = vmatpush1.xpose.msra.mxu0 0.0
        %691 = vmatprep.subr.mxu0 0.0
        %692 = vmatpush1.xpose.msra.mxu0 0.0
        %693 = vmatprep.subr.mxu0 0.0
        %694 = vmatpush1.xpose.msra.mxu0 0.0
        %695 = vmatprep.subr.mxu0 0.0
        %696 = vmatpush1.xpose.msra.mxu0 0.0
        %697 = vmatprep.subr.mxu0 0.0
        %698 = vmatpush1.xpose.msra.mxu0 0.0
        %699 = vmatprep.mubr.f32.mxu0 0.0
        %700 = vmatmul.mubr.f32.gmra.mrb[0].mxu0 %v627
        %v701 = vpop.f32.mrb[0].mxu0
        %v702 = vadd.f32 0.0, %v701
        %v703 = vpop.f32.mrb[0].mxu0
        %704 = vdwg.mxu0
        %v705 = vmul.f32 %v702, 0.35355338
        %v706 = vadd.f32 %v705, %v621
        %vm707 = vcmask 130048
        %v708 = vsel %vm707, %v706, -inf
        %709 = vmax.xlane.f32.xlu0 %v708
        %v710 = vpop.xlane.xlu0 %709
        %v711 = vsub.f32 %v706, %v710
        %v712 = vmul.f32 %v711, 1.442695
        %v713 = vpow.pop %v712
        %v714 = vsel %vm707, %v713, 0.0
        %715 = vadd.xlane.f32.xlu0 %v714
        %v716 = vpop.xlane.xlu0 %715
        %v717 = vrcp.pop %v716
        %v718 = vmul.f32 %v713, %v717
        %719 = vst.msk [vmem:[%s432] sm:$0xff] %vm707, %v718
        %720 = vrot.lane.b32.xlu0 %v623, 96
        %v721 = vpop.permute.xlu0 %720
        %722 = vrot.lane.b32.xlu0 %v624, 96
        %v723 = vpop.permute.xlu0 %722
        %v727 = vsel %vm707, %v718, 0
        %729 = vmatprep.subr.mxu0 0.0
        %730 = vmatpush1.msra.mxu0 %v721
        %731 = vmatprep.subr.mxu0 0.0
        %732 = vmatpush1.msra.mxu0 %v723
        %733 = vmatprep.subr.mxu0 0.0
        %734 = vmatpush1.msra.mxu0 0.0
        %735 = vmatprep.subr.mxu0 0.0
        %736 = vmatpush1.msra.mxu0 0.0
        %737 = vmatprep.subr.mxu0 0.0
        %738 = vmatpush1.msra.mxu0 0.0
        %739 = vmatprep.subr.mxu0 0.0
        %740 = vmatpush1.msra.mxu0 0.0
        %741 = vmatprep.subr.mxu0 0.0
        %742 = vmatpush1.msra.mxu0 0.0
        %743 = vmatprep.subr.mxu0 0.0
        %744 = vmatpush1.msra.mxu0 0.0
        %745 = vmatprep.subr.mxu0 0.0
        %746 = vmatpush1.msra.mxu0 0.0
        %747 = vmatprep.subr.mxu0 0.0
        %748 = vmatpush1.msra.mxu0 0.0
        %749 = vmatprep.subr.mxu0 0.0
        %750 = vmatpush1.msra.mxu0 0.0
        %751 = vmatprep.subr.mxu0 0.0
        %752 = vmatpush1.msra.mxu0 0.0
        %753 = vmatprep.subr.mxu0 0.0
        %754 = vmatpush1.msra.mxu0 0.0
        %755 = vmatprep.subr.mxu0 0.0
        %756 = vmatpush1.msra.mxu0 0.0
        %757 = vmatprep.subr.mxu0 0.0
        %758 = vmatpush1.msra.mxu0 0.0
        %759 = vmatprep.subr.mxu0 0.0
        %760 = vmatpush1.msra.mxu0 0.0
        %761 = vmatprep.subr.mxu0 0.0
        %762 = vmatpush1.msra.mxu0 0.0
        %763 = vmatprep.subr.mxu0 0.0
        %764 = vmatpush1.msra.mxu0 0.0
        %765 = vmatprep.subr.mxu0 0.0
        %766 = vmatpush1.msra.mxu0 0.0
        %767 = vmatprep.subr.mxu0 0.0
        %768 = vmatpush1.msra.mxu0 0.0
        %769 = vmatprep.subr.mxu0 0.0
        %770 = vmatpush1.msra.mxu0 0.0
        %771 = vmatprep.subr.mxu0 0.0
        %772 = vmatpush1.msra.mxu0 0.0
        %773 = vmatprep.subr.mxu0 0.0
        %774 = vmatpush1.msra.mxu0 0.0
        %775 = vmatprep.subr.mxu0 0.0
        %776 = vmatpush1.msra.mxu0 0.0
        %777 = vmatprep.subr.mxu0 0.0
        %778 = vmatpush1.msra.mxu0 0.0
        %779 = vmatprep.subr.mxu0 0.0
        %780 = vmatpush1.msra.mxu0 0.0
        %781 = vmatprep.subr.mxu0 0.0
        %782 = vmatpush1.msra.mxu0 0.0
        %783 = vmatprep.subr.mxu0 0.0
        %784 = vmatpush1.msra.mxu0 0.0
        %785 = vmatprep.subr.mxu0 0.0
        %786 = vmatpush1.msra.mxu0 0.0
        %787 = vmatprep.subr.mxu0 0.0
        %788 = vmatpush1.msra.mxu0 0.0
        %789 = vmatprep.subr.mxu0 0.0
        %790 = vmatpush1.msra.mxu0 0.0
        %791 = vmatprep.subr.mxu0 0.0
        %792 = vmatpush1.msra.mxu0 0.0
        %793 = vmatprep.mubr.f32.mxu0 0.0
        %794 = vmatmul.mubr.f32.gmra.mrb[0].mxu0 %v727
        %v795 = vpop.f32.mrb[0].mxu0
        %v796 = vadd.f32 0.0, %v795
        %v797 = vpop.f32.mrb[0].mxu0
        %798 = vdwg.mxu0
        %799 = vst.msk [vmem:[#allocation3] sm:$0xff] %vm625, %v796
        %v800 = vld [vmem:[#allocation2] sm:$0xff]
        %v801 = vld [vmem:[#allocation2 + $0x8] sm:$0xff]
        %802 = vrot.lane.b32.xlu0 %v611, 120
        %v803 = vpop.permute.xlu0 %802
        %806 = vrot.lane.b32.xlu0 %v800, 120
        %v807 = vpop.permute.xlu0 %806
        %808 = vrot.lane.b32.xlu0 %v801, 120
        %v809 = vpop.permute.xlu0 %808
        %v810 = vsel %vm625, %v803, 0
        %v812 = vsel %vm625, %v807, 0
        %v814 = vsel %vm625, %v809, 0
        %816 = vmatprep.subr.mxu0 0.0
        %817 = vmatpush1.xpose.msra.mxu0 %v812
        %818 = vmatprep.subr.mxu0 0.0
        %819 = vmatpush1.xpose.msra.mxu0 %v814
        %820 = vmatprep.subr.mxu0 0.0
        %821 = vmatpush1.xpose.msra.mxu0 0.0
        %822 = vmatprep.subr.mxu0 0.0
        %823 = vmatpush1.xpose.msra.mxu0 0.0
        %824 = vmatprep.subr.mxu0 0.0
        %825 = vmatpush1.xpose.msra.mxu0 0.0
        %826 = vmatprep.subr.mxu0 0.0
        %827 = vmatpush1.xpose.msra.mxu0 0.0
        %828 = vmatprep.subr.mxu0 0.0
        %829 = vmatpush1.xpose.msra.mxu0 0.0
        %830 = vmatprep.subr.mxu0 0.0
        %831 = vmatpush1.xpose.msra.mxu0 0.0
        %832 = vmatprep.subr.mxu0 0.0
        %833 = vmatpush1.xpose.msra.mxu0 0.0
        %834 = vmatprep.subr.mxu0 0.0
        %835 = vmatpush1.xpose.msra.mxu0 0.0
        %836 = vmatprep.subr.mxu0 0.0
        %837 = vmatpush1.xpose.msra.mxu0 0.0
        %838 = vmatprep.subr.mxu0 0.0
        %839 = vmatpush1.xpose.msra.mxu0 0.0
        %840 = vmatprep.subr.mxu0 0.0
        %841 = vmatpush1.xpose.msra.mxu0 0.0
        %842 = vmatprep.subr.mxu0 0.0
        %843 = vmatpush1.xpose.msra.mxu0 0.0
        %844 = vmatprep.subr.mxu0 0.0
        %845 = vmatpush1.xpose.msra.mxu0 0.0
        %846 = vmatprep.subr.mxu0 0.0
        %847 = vmatpush1.xpose.msra.mxu0 0.0
        %848 = vmatprep.subr.mxu0 0.0
        %849 = vmatpush1.xpose.msra.mxu0 0.0
        %850 = vmatprep.subr.mxu0 0.0
        %851 = vmatpush1.xpose.msra.mxu0 0.0
        %852 = vmatprep.subr.mxu0 0.0
        %853 = vmatpush1.xpose.msra.mxu0 0.0
        %854 = vmatprep.subr.mxu0 0.0
        %855 = vmatpush1.xpose.msra.mxu0 0.0
        %856 = vmatprep.subr.mxu0 0.0
        %857 = vmatpush1.xpose.msra.mxu0 0.0
        %858 = vmatprep.subr.mxu0 0.0
        %859 = vmatpush1.xpose.msra.mxu0 0.0
        %860 = vmatprep.subr.mxu0 0.0
        %861 = vmatpush1.xpose.msra.mxu0 0.0
        %862 = vmatprep.subr.mxu0 0.0
        %863 = vmatpush1.xpose.msra.mxu0 0.0
        %864 = vmatprep.subr.mxu0 0.0
        %865 = vmatpush1.xpose.msra.mxu0 0.0
        %866 = vmatprep.subr.mxu0 0.0
        %867 = vmatpush1.xpose.msra.mxu0 0.0
        %868 = vmatprep.subr.mxu0 0.0
        %869 = vmatpush1.xpose.msra.mxu0 0.0
        %870 = vmatprep.subr.mxu0 0.0
        %871 = vmatpush1.xpose.msra.mxu0 0.0
        %872 = vmatprep.subr.mxu0 0.0
        %873 = vmatpush1.xpose.msra.mxu0 0.0
        %874 = vmatprep.subr.mxu0 0.0
        %875 = vmatpush1.xpose.msra.mxu0 0.0
        %876 = vmatprep.subr.mxu0 0.0
        %877 = vmatpush1.xpose.msra.mxu0 0.0
        %878 = vmatprep.subr.mxu0 0.0
        %879 = vmatpush1.xpose.msra.mxu0 0.0
        %880 = vmatprep.mubr.f32.mxu0 0.0
        %881 = vmatmul.mubr.f32.gmra.mrb[0].mxu0 %v810
        %v882 = vpop.f32.mrb[0].mxu0
        %v883 = vadd.f32 0.0, %v882
        %v884 = vpop.f32.mrb[0].mxu0
        %885 = vdwg.mxu0
        %v886 = vmul.f32 %v883, 0.35355338
        %v887 = vadd.f32 %v886, %v621
        %v888 = vsel %vm707, %v887, -inf
        %889 = vmax.xlane.f32.xlu0 %v888
        %v890 = vpop.xlane.xlu0 %889
        %v891 = vsub.f32 %v887, %v890
        %v892 = vmul.f32 %v891, 1.442695
        %v893 = vpow.pop %v892
        %v894 = vsel %vm707, %v893, 0.0
        %895 = vadd.xlane.f32.xlu0 %v894
        %v896 = vpop.xlane.xlu0 %895
        %v897 = vrcp.pop %v896
        %v898 = vmul.f32 %v893, %v897
        %s899 = scalar_lea.vmem %s432, 8 [#allocation13]
        %900 = vst.msk [vmem:[%s899] sm:$0xff] %vm707, %v898
        %901 = vrot.lane.b32.xlu0 %v800, 88
        %v902 = vpop.permute.xlu0 %901
        %903 = vrot.lane.b32.xlu0 %v801, 88
        %v904 = vpop.permute.xlu0 %903
        %v908 = vsel %vm707, %v898, 0
        %910 = vmatprep.subr.mxu0 0.0
        %911 = vmatpush1.msra.mxu0 %v902
        %912 = vmatprep.subr.mxu0 0.0
        %913 = vmatpush1.msra.mxu0 %v904
        %914 = vmatprep.subr.mxu0 0.0
        %915 = vmatpush1.msra.mxu0 0.0
        %916 = vmatprep.subr.mxu0 0.0
        %917 = vmatpush1.msra.mxu0 0.0
        %918 = vmatprep.subr.mxu0 0.0
        %919 = vmatpush1.msra.mxu0 0.0
        %920 = vmatprep.subr.mxu0 0.0
        %921 = vmatpush1.msra.mxu0 0.0
        %922 = vmatprep.subr.mxu0 0.0
        %923 = vmatpush1.msra.mxu0 0.0
        %924 = vmatprep.subr.mxu0 0.0
        %925 = vmatpush1.msra.mxu0 0.0
        %926 = vmatprep.subr.mxu0 0.0
        %927 = vmatpush1.msra.mxu0 0.0
        %928 = vmatprep.subr.mxu0 0.0
        %929 = vmatpush1.msra.mxu0 0.0
        %930 = vmatprep.subr.mxu0 0.0
        %931 = vmatpush1.msra.mxu0 0.0
        %932 = vmatprep.subr.mxu0 0.0
        %933 = vmatpush1.msra.mxu0 0.0
        %934 = vmatprep.subr.mxu0 0.0
        %935 = vmatpush1.msra.mxu0 0.0
        %936 = vmatprep.subr.mxu0 0.0
        %937 = vmatpush1.msra.mxu0 0.0
        %938 = vmatprep.subr.mxu0 0.0
        %939 = vmatpush1.msra.mxu0 0.0
        %940 = vmatprep.subr.mxu0 0.0
        %941 = vmatpush1.msra.mxu0 0.0
        %942 = vmatprep.subr.mxu0 0.0
        %943 = vmatpush1.msra.mxu0 0.0
        %944 = vmatprep.subr.mxu0 0.0
        %945 = vmatpush1.msra.mxu0 0.0
        %946 = vmatprep.subr.mxu0 0.0
        %947 = vmatpush1.msra.mxu0 0.0
        %948 = vmatprep.subr.mxu0 0.0
        %949 = vmatpush1.msra.mxu0 0.0
        %950 = vmatprep.subr.mxu0 0.0
        %951 = vmatpush1.msra.mxu0 0.0
        %952 = vmatprep.subr.mxu0 0.0
        %953 = vmatpush1.msra.mxu0 0.0
        %954 = vmatprep.subr.mxu0 0.0
        %955 = vmatpush1.msra.mxu0 0.0
        %956 = vmatprep.subr.mxu0 0.0
        %957 = vmatpush1.msra.mxu0 0.0
        %958 = vmatprep.subr.mxu0 0.0
        %959 = vmatpush1.msra.mxu0 0.0
        %960 = vmatprep.subr.mxu0 0.0
        %961 = vmatpush1.msra.mxu0 0.0
        %962 = vmatprep.subr.mxu0 0.0
        %963 = vmatpush1.msra.mxu0 0.0
        %964 = vmatprep.subr.mxu0 0.0
        %965 = vmatpush1.msra.mxu0 0.0
        %966 = vmatprep.subr.mxu0 0.0
        %967 = vmatpush1.msra.mxu0 0.0
        %968 = vmatprep.subr.mxu0 0.0
        %969 = vmatpush1.msra.mxu0 0.0
        %970 = vmatprep.subr.mxu0 0.0
        %971 = vmatpush1.msra.mxu0 0.0
        %972 = vmatprep.subr.mxu0 0.0
        %973 = vmatpush1.msra.mxu0 0.0
        %974 = vmatprep.mubr.f32.mxu0 0.0
        %975 = vmatmul.mubr.f32.gmra.mrb[0].mxu0 %v908
        %v976 = vpop.f32.mrb[0].mxu0
        %v977 = vadd.f32 0.0, %v976
        %v978 = vpop.f32.mrb[0].mxu0
        %979 = vdwg.mxu0
        %981 = vrot.lane.b32.xlu0 %v977, 8
        %v982 = vpop.permute.xlu0 %981
        %vm984 = vcmask 130112
        %985 = vst.msk [vmem:[#allocation3] sm:$0xff] %vm984, %v982
        %v986 = vld [vmem:[#allocation2] sm:$0xff]
        %v987 = vld [vmem:[#allocation2 + $0x8] sm:$0xff]
        %988 = vrot.lane.b32.xlu0 %v611, 112
        %v989 = vpop.permute.xlu0 %988
        %992 = vrot.lane.b32.xlu0 %v986, 112
        %v993 = vpop.permute.xlu0 %992
        %994 = vrot.lane.b32.xlu0 %v987, 112
        %v995 = vpop.permute.xlu0 %994
        %v996 = vsel %vm625, %v989, 0
        %v998 = vsel %vm625, %v993, 0
        %v1000 = vsel %vm625, %v995, 0
        %1002 = vmatprep.subr.mxu0 0.0
        %1003 = vmatpush1.xpose.msra.mxu0 %v998
        %1004 = vmatprep.subr.mxu0 0.0
        %1005 = vmatpush1.xpose.msra.mxu0 %v1000
        %1006 = vmatprep.subr.mxu0 0.0
        %1007 = vmatpush1.xpose.msra.mxu0 0.0
        %1008 = vmatprep.subr.mxu0 0.0
        %1009 = vmatpush1.xpose.msra.mxu0 0.0
        %1010 = vmatprep.subr.mxu0 0.0
        %1011 = vmatpush1.xpose.msra.mxu0 0.0
        %1012 = vmatprep.subr.mxu0 0.0
        %1013 = vmatpush1.xpose.msra.mxu0 0.0
        %1014 = vmatprep.subr.mxu0 0.0
        %1015 = vmatpush1.xpose.msra.mxu0 0.0
        %1016 = vmatprep.subr.mxu0 0.0
        %1017 = vmatpush1.xpose.msra.mxu0 0.0
        %1018 = vmatprep.subr.mxu0 0.0
        %1019 = vmatpush1.xpose.msra.mxu0 0.0
        %1020 = vmatprep.subr.mxu0 0.0
        %1021 = vmatpush1.xpose.msra.mxu0 0.0
        %1022 = vmatprep.subr.mxu0 0.0
        %1023 = vmatpush1.xpose.msra.mxu0 0.0
        %1024 = vmatprep.subr.mxu0 0.0
        %1025 = vmatpush1.xpose.msra.mxu0 0.0
        %1026 = vmatprep.subr.mxu0 0.0
        %1027 = vmatpush1.xpose.msra.mxu0 0.0
        %1028 = vmatprep.subr.mxu0 0.0
        %1029 = vmatpush1.xpose.msra.mxu0 0.0
        %1030 = vmatprep.subr.mxu0 0.0
        %1031 = vmatpush1.xpose.msra.mxu0 0.0
        %1032 = vmatprep.subr.mxu0 0.0
        %1033 = vmatpush1.xpose.msra.mxu0 0.0
        %1034 = vmatprep.subr.mxu0 0.0
        %1035 = vmatpush1.xpose.msra.mxu0 0.0
        %1036 = vmatprep.subr.mxu0 0.0
        %1037 = vmatpush1.xpose.msra.mxu0 0.0
        %1038 = vmatprep.subr.mxu0 0.0
        %1039 = vmatpush1.xpose.msra.mxu0 0.0
        %1040 = vmatprep.subr.mxu0 0.0
        %1041 = vmatpush1.xpose.msra.mxu0 0.0
        %1042 = vmatprep.subr.mxu0 0.0
        %1043 = vmatpush1.xpose.msra.mxu0 0.0
        %1044 = vmatprep.subr.mxu0 0.0
        %1045 = vmatpush1.xpose.msra.mxu0 0.0
        %1046 = vmatprep.subr.mxu0 0.0
        %1047 = vmatpush1.xpose.msra.mxu0 0.0
        %1048 = vmatprep.subr.mxu0 0.0
        %1049 = vmatpush1.xpose.msra.mxu0 0.0
        %1050 = vmatprep.subr.mxu0 0.0
        %1051 = vmatpush1.xpose.msra.mxu0 0.0
        %1052 = vmatprep.subr.mxu0 0.0
        %1053 = vmatpush1.xpose.msra.mxu0 0.0
        %1054 = vmatprep.subr.mxu0 0.0
        %1055 = vmatpush1.xpose.msra.mxu0 0.0
        %1056 = vmatprep.subr.mxu0 0.0
        %1057 = vmatpush1.xpose.msra.mxu0 0.0
        %1058 = vmatprep.subr.mxu0 0.0
        %1059 = vmatpush1.xpose.msra.mxu0 0.0
        %1060 = vmatprep.subr.mxu0 0.0
        %1061 = vmatpush1.xpose.msra.mxu0 0.0
        %1062 = vmatprep.subr.mxu0 0.0
        %1063 = vmatpush1.xpose.msra.mxu0 0.0
        %1064 = vmatprep.subr.mxu0 0.0
        %1065 = vmatpush1.xpose.msra.mxu0 0.0
        %1066 = vmatprep.mubr.f32.mxu0 0.0
        %1067 = vmatmul.mubr.f32.gmra.mrb[0].mxu0 %v996
        %v1068 = vpop.f32.mrb[0].mxu0
        %v1069 = vadd.f32 0.0, %v1068
        %v1070 = vpop.f32.mrb[0].mxu0
        %1071 = vdwg.mxu0
        %v1072 = vmul.f32 %v1069, 0.35355338
        %v1073 = vadd.f32 %v1072, %v621
        %v1074 = vsel %vm707, %v1073, -inf
        %1075 = vmax.xlane.f32.xlu0 %v1074
        %v1076 = vpop.xlane.xlu0 %1075
        %v1077 = vsub.f32 %v1073, %v1076
        %v1078 = vmul.f32 %v1077, 1.442695
        %v1079 = vpow.pop %v1078
        %v1080 = vsel %vm707, %v1079, 0.0
        %1081 = vadd.xlane.f32.xlu0 %v1080
        %v1082 = vpop.xlane.xlu0 %1081
        %v1083 = vrcp.pop %v1082
        %v1084 = vmul.f32 %v1079, %v1083
        %s1085 = scalar_lea.vmem %s432, 16 [#allocation13]
        %1086 = vst.msk [vmem:[%s1085] sm:$0xff] %vm707, %v1084
        %1087 = vrot.lane.b32.xlu0 %v986, 80
        %v1088 = vpop.permute.xlu0 %1087
        %1089 = vrot.lane.b32.xlu0 %v987, 80
        %v1090 = vpop.permute.xlu0 %1089
        %v1094 = vsel %vm707, %v1084, 0
        %1096 = vmatprep.subr.mxu0 0.0
        %1097 = vmatpush1.msra.mxu0 %v1088
        %1098 = vmatprep.subr.mxu0 0.0
        %1099 = vmatpush1.msra.mxu0 %v1090
        %1100 = vmatprep.subr.mxu0 0.0
        %1101 = vmatpush1.msra.mxu0 0.0
        %1102 = vmatprep.subr.mxu0 0.0
        %1103 = vmatpush1.msra.mxu0 0.0
        %1104 = vmatprep.subr.mxu0 0.0
        %1105 = vmatpush1.msra.mxu0 0.0
        %1106 = vmatprep.subr.mxu0 0.0
        %1107 = vmatpush1.msra.mxu0 0.0
        %1108 = vmatprep.subr.mxu0 0.0
        %1109 = vmatpush1.msra.mxu0 0.0
        %1110 = vmatprep.subr.mxu0 0.0
        %1111 = vmatpush1.msra.mxu0 0.0
        %1112 = vmatprep.subr.mxu0 0.0
        %1113 = vmatpush1.msra.mxu0 0.0
        %1114 = vmatprep.subr.mxu0 0.0
        %1115 = vmatpush1.msra.mxu0 0.0
        %1116 = vmatprep.subr.mxu0 0.0
        %1117 = vmatpush1.msra.mxu0 0.0
        %1118 = vmatprep.subr.mxu0 0.0
        %1119 = vmatpush1.msra.mxu0 0.0
        %1120 = vmatprep.subr.mxu0 0.0
        %1121 = vmatpush1.msra.mxu0 0.0
        %1122 = vmatprep.subr.mxu0 0.0
        %1123 = vmatpush1.msra.mxu0 0.0
        %1124 = vmatprep.subr.mxu0 0.0
        %1125 = vmatpush1.msra.mxu0 0.0
        %1126 = vmatprep.subr.mxu0 0.0
        %1127 = vmatpush1.msra.mxu0 0.0
        %1128 = vmatprep.subr.mxu0 0.0
        %1129 = vmatpush1.msra.mxu0 0.0
        %1130 = vmatprep.subr.mxu0 0.0
        %1131 = vmatpush1.msra.mxu0 0.0
        %1132 = vmatprep.subr.mxu0 0.0
        %1133 = vmatpush1.msra.mxu0 0.0
        %1134 = vmatprep.subr.mxu0 0.0
        %1135 = vmatpush1.msra.mxu0 0.0
        %1136 = vmatprep.subr.mxu0 0.0
        %1137 = vmatpush1.msra.mxu0 0.0
        %1138 = vmatprep.subr.mxu0 0.0
        %1139 = vmatpush1.msra.mxu0 0.0
        %1140 = vmatprep.subr.mxu0 0.0
        %1141 = vmatpush1.msra.mxu0 0.0
        %1142 = vmatprep.subr.mxu0 0.0
        %1143 = vmatpush1.msra.mxu0 0.0
        %1144 = vmatprep.subr.mxu0 0.0
        %1145 = vmatpush1.msra.mxu0 0.0
        %1146 = vmatprep.subr.mxu0 0.0
        %1147 = vmatpush1.msra.mxu0 0.0
        %1148 = vmatprep.subr.mxu0 0.0
        %1149 = vmatpush1.msra.mxu0 0.0
        %1150 = vmatprep.subr.mxu0 0.0
        %1151 = vmatpush1.msra.mxu0 0.0
        %1152 = vmatprep.subr.mxu0 0.0
        %1153 = vmatpush1.msra.mxu0 0.0
        %1154 = vmatprep.subr.mxu0 0.0
        %1155 = vmatpush1.msra.mxu0 0.0
        %1156 = vmatprep.subr.mxu0 0.0
        %1157 = vmatpush1.msra.mxu0 0.0
        %1158 = vmatprep.subr.mxu0 0.0
        %1159 = vmatpush1.msra.mxu0 0.0
        %1160 = vmatprep.mubr.f32.mxu0 0.0
        %1161 = vmatmul.mubr.f32.gmra.mrb[0].mxu0 %v1094
        %v1162 = vpop.f32.mrb[0].mxu0
        %v1163 = vadd.f32 0.0, %v1162
        %v1164 = vpop.f32.mrb[0].mxu0
        %1165 = vdwg.mxu0
        %1167 = vrot.lane.b32.xlu0 %v1163, 16
        %v1168 = vpop.permute.xlu0 %1167
        %vm1170 = vcmask 195712
        %1171 = vst.msk [vmem:[#allocation3] sm:$0xff] %vm1170, %v1168
        %v1172 = vld [vmem:[#allocation2] sm:$0xff]
        %v1173 = vld [vmem:[#allocation2 + $0x8] sm:$0xff]
        %1174 = vrot.lane.b32.xlu0 %v611, 104
        %v1175 = vpop.permute.xlu0 %1174
        %1178 = vrot.lane.b32.xlu0 %v1172, 104
        %v1179 = vpop.permute.xlu0 %1178
        %1180 = vrot.lane.b32.xlu0 %v1173, 104
        %v1181 = vpop.permute.xlu0 %1180
        %v1182 = vsel %vm625, %v1175, 0
        %v1184 = vsel %vm625, %v1179, 0
        %v1186 = vsel %vm625, %v1181, 0
        %1188 = vmatprep.subr.mxu0 0.0
        %1189 = vmatpush1.xpose.msra.mxu0 %v1184
        %1190 = vmatprep.subr.mxu0 0.0
        %1191 = vmatpush1.xpose.msra.mxu0 %v1186
        %1192 = vmatprep.subr.mxu0 0.0
        %1193 = vmatpush1.xpose.msra.mxu0 0.0
        %1194 = vmatprep.subr.mxu0 0.0
        %1195 = vmatpush1.xpose.msra.mxu0 0.0
        %1196 = vmatprep.subr.mxu0 0.0
        %1197 = vmatpush1.xpose.msra.mxu0 0.0
        %1198 = vmatprep.subr.mxu0 0.0
        %1199 = vmatpush1.xpose.msra.mxu0 0.0
        %1200 = vmatprep.subr.mxu0 0.0
        %1201 = vmatpush1.xpose.msra.mxu0 0.0
        %1202 = vmatprep.subr.mxu0 0.0
        %1203 = vmatpush1.xpose.msra.mxu0 0.0
        %1204 = vmatprep.subr.mxu0 0.0
        %1205 = vmatpush1.xpose.msra.mxu0 0.0
        %1206 = vmatprep.subr.mxu0 0.0
        %1207 = vmatpush1.xpose.msra.mxu0 0.0
        %1208 = vmatprep.subr.mxu0 0.0
        %1209 = vmatpush1.xpose.msra.mxu0 0.0
        %1210 = vmatprep.subr.mxu0 0.0
        %1211 = vmatpush1.xpose.msra.mxu0 0.0
        %1212 = vmatprep.subr.mxu0 0.0
        %1213 = vmatpush1.xpose.msra.mxu0 0.0
        %1214 = vmatprep.subr.mxu0 0.0
        %1215 = vmatpush1.xpose.msra.mxu0 0.0
        %1216 = vmatprep.subr.mxu0 0.0
        %1217 = vmatpush1.xpose.msra.mxu0 0.0
        %1218 = vmatprep.subr.mxu0 0.0
        %1219 = vmatpush1.xpose.msra.mxu0 0.0
        %1220 = vmatprep.subr.mxu0 0.0
        %1221 = vmatpush1.xpose.msra.mxu0 0.0
        %1222 = vmatprep.subr.mxu0 0.0
        %1223 = vmatpush1.xpose.msra.mxu0 0.0
        %1224 = vmatprep.subr.mxu0 0.0
        %1225 = vmatpush1.xpose.msra.mxu0 0.0
        %1226 = vmatprep.subr.mxu0 0.0
        %1227 = vmatpush1.xpose.msra.mxu0 0.0
        %1228 = vmatprep.subr.mxu0 0.0
        %1229 = vmatpush1.xpose.msra.mxu0 0.0
        %1230 = vmatprep.subr.mxu0 0.0
        %1231 = vmatpush1.xpose.msra.mxu0 0.0
        %1232 = vmatprep.subr.mxu0 0.0
        %1233 = vmatpush1.xpose.msra.mxu0 0.0
        %1234 = vmatprep.subr.mxu0 0.0
        %1235 = vmatpush1.xpose.msra.mxu0 0.0
        %1236 = vmatprep.subr.mxu0 0.0
        %1237 = vmatpush1.xpose.msra.mxu0 0.0
        %1238 = vmatprep.subr.mxu0 0.0
        %1239 = vmatpush1.xpose.msra.mxu0 0.0
        %1240 = vmatprep.subr.mxu0 0.0
        %1241 = vmatpush1.xpose.msra.mxu0 0.0
        %1242 = vmatprep.subr.mxu0 0.0
        %1243 = vmatpush1.xpose.msra.mxu0 0.0
        %1244 = vmatprep.subr.mxu0 0.0
        %1245 = vmatpush1.xpose.msra.mxu0 0.0
        %1246 = vmatprep.subr.mxu0 0.0
        %1247 = vmatpush1.xpose.msra.mxu0 0.0
        %1248 = vmatprep.subr.mxu0 0.0
        %1249 = vmatpush1.xpose.msra.mxu0 0.0
        %1250 = vmatprep.subr.mxu0 0.0
        %1251 = vmatpush1.xpose.msra.mxu0 0.0
        %1252 = vmatprep.mubr.f32.mxu0 0.0
        %1253 = vmatmul.mubr.f32.gmra.mrb[0].mxu0 %v1182
        %v1254 = vpop.f32.mrb[0].mxu0
        %v1255 = vadd.f32 0.0, %v1254
        %v1256 = vpop.f32.mrb[0].mxu0
        %1257 = vdwg.mxu0
        %v1258 = vmul.f32 %v1255, 0.35355338
        %v1259 = vadd.f32 %v1258, %v621
        %v1260 = vsel %vm707, %v1259, -inf
        %1261 = vmax.xlane.f32.xlu0 %v1260
        %v1262 = vpop.xlane.xlu0 %1261
        %v1263 = vsub.f32 %v1259, %v1262
        %v1264 = vmul.f32 %v1263, 1.442695
        %v1265 = vpow.pop %v1264
        %v1266 = vsel %vm707, %v1265, 0.0
        %1267 = vadd.xlane.f32.xlu0 %v1266
        %v1268 = vpop.xlane.xlu0 %1267
        %v1269 = vrcp.pop %v1268
        %v1270 = vmul.f32 %v1265, %v1269
        %s1271 = scalar_lea.vmem %s432, 24 [#allocation13]
        %1272 = vst.msk [vmem:[%s1271] sm:$0xff] %vm707, %v1270
        %1273 = vrot.lane.b32.xlu0 %v1172, 72
        %v1274 = vpop.permute.xlu0 %1273
        %1275 = vrot.lane.b32.xlu0 %v1173, 72
        %v1276 = vpop.permute.xlu0 %1275
        %v1280 = vsel %vm707, %v1270, 0
        %1282 = vmatprep.subr.mxu0 0.0
        %1283 = vmatpush1.msra.mxu0 %v1274
        %1284 = vmatprep.subr.mxu0 0.0
        %1285 = vmatpush1.msra.mxu0 %v1276
        %1286 = vmatprep.subr.mxu0 0.0
        %1287 = vmatpush1.msra.mxu0 0.0
        %1288 = vmatprep.subr.mxu0 0.0
        %1289 = vmatpush1.msra.mxu0 0.0
        %1290 = vmatprep.subr.mxu0 0.0
        %1291 = vmatpush1.msra.mxu0 0.0
        %1292 = vmatprep.subr.mxu0 0.0
        %1293 = vmatpush1.msra.mxu0 0.0
        %1294 = vmatprep.subr.mxu0 0.0
        %1295 = vmatpush1.msra.mxu0 0.0
        %1296 = vmatprep.subr.mxu0 0.0
        %1297 = vmatpush1.msra.mxu0 0.0
        %1298 = vmatprep.subr.mxu0 0.0
        %1299 = vmatpush1.msra.mxu0 0.0
        %1300 = vmatprep.subr.mxu0 0.0
        %1301 = vmatpush1.msra.mxu0 0.0
        %1302 = vmatprep.subr.mxu0 0.0
        %1303 = vmatpush1.msra.mxu0 0.0
        %1304 = vmatprep.subr.mxu0 0.0
        %1305 = vmatpush1.msra.mxu0 0.0
        %1306 = vmatprep.subr.mxu0 0.0
        %1307 = vmatpush1.msra.mxu0 0.0
        %1308 = vmatprep.subr.mxu0 0.0
        %1309 = vmatpush1.msra.mxu0 0.0
        %1310 = vmatprep.subr.mxu0 0.0
        %1311 = vmatpush1.msra.mxu0 0.0
        %1312 = vmatprep.subr.mxu0 0.0
        %1313 = vmatpush1.msra.mxu0 0.0
        %1314 = vmatprep.subr.mxu0 0.0
        %1315 = vmatpush1.msra.mxu0 0.0
        %1316 = vmatprep.subr.mxu0 0.0
        %1317 = vmatpush1.msra.mxu0 0.0
        %1318 = vmatprep.subr.mxu0 0.0
        %1319 = vmatpush1.msra.mxu0 0.0
        %1320 = vmatprep.subr.mxu0 0.0
        %1321 = vmatpush1.msra.mxu0 0.0
        %1322 = vmatprep.subr.mxu0 0.0
        %1323 = vmatpush1.msra.mxu0 0.0
        %1324 = vmatprep.subr.mxu0 0.0
        %1325 = vmatpush1.msra.mxu0 0.0
        %1326 = vmatprep.subr.mxu0 0.0
        %1327 = vmatpush1.msra.mxu0 0.0
        %1328 = vmatprep.subr.mxu0 0.0
        %1329 = vmatpush1.msra.mxu0 0.0
        %1330 = vmatprep.subr.mxu0 0.0
        %1331 = vmatpush1.msra.mxu0 0.0
        %1332 = vmatprep.subr.mxu0 0.0
        %1333 = vmatpush1.msra.mxu0 0.0
        %1334 = vmatprep.subr.mxu0 0.0
        %1335 = vmatpush1.msra.mxu0 0.0
        %1336 = vmatprep.subr.mxu0 0.0
        %1337 = vmatpush1.msra.mxu0 0.0
        %1338 = vmatprep.subr.mxu0 0.0
        %1339 = vmatpush1.msra.mxu0 0.0
        %1340 = vmatprep.subr.mxu0 0.0
        %1341 = vmatpush1.msra.mxu0 0.0
        %1342 = vmatprep.subr.mxu0 0.0
        %1343 = vmatpush1.msra.mxu0 0.0
        %1344 = vmatprep.subr.mxu0 0.0
        %1345 = vmatpush1.msra.mxu0 0.0
        %1346 = vmatprep.mubr.f32.mxu0 0.0
        %1347 = vmatmul.mubr.f32.gmra.mrb[0].mxu0 %v1280
        %v1348 = vpop.f32.mrb[0].mxu0
        %v1349 = vadd.f32 0.0, %v1348
        %v1350 = vpop.f32.mrb[0].mxu0
        %1351 = vdwg.mxu0
        %1353 = vrot.lane.b32.xlu0 %v1349, 24
        %v1354 = vpop.permute.xlu0 %1353
        %vm1356 = vcmask 261312
        %1357 = vst.msk [vmem:[#allocation3] sm:$0xff] %vm1356, %v1354
        %v1358 = vld [vmem:[#allocation3] sm:$0xff]
        %v1359 = vld [vmem:[#allocation10] sm:$0xff]
        %v1360 = vld [vmem:[#allocation10 + $0x8] sm:$0xff]
        %v1361 = vld [vmem:[#allocation10 + $0x10] sm:$0xff]
        %v1362 = vld [vmem:[#allocation10 + $0x18] sm:$0xff]
        %v1363 = vld [vmem:[%s5] sm:$0x1]
        %v1365 = vlaneseq
        %v1366 = vshrl.u32 %v1365, 7
        %v1367 = vsub.s32 0, %v1366
        %v1368 = vrot.slane %v1363, %v1367
        %v1371 = vsel %vm540, %v1358, 0
        %1373 = vmatprep.subr.mxu0 0.0
        %1374 = vmatpush1.msra.mxu0 %v1359
        %1375 = vmatprep.subr.mxu0 0.0
        %1376 = vmatpush1.msra.mxu0 %v1360
        %1377 = vmatprep.subr.mxu0 0.0
        %1378 = vmatpush1.msra.mxu0 %v1361
        %1379 = vmatprep.subr.mxu0 0.0
        %1380 = vmatpush1.msra.mxu0 %v1362
        %1381 = vmatprep.subr.mxu0 0.0
        %1382 = vmatpush1.msra.mxu0 0.0
        %1383 = vmatprep.subr.mxu0 0.0
        %1384 = vmatpush1.msra.mxu0 0.0
        %1385 = vmatprep.subr.mxu0 0.0
        %1386 = vmatpush1.msra.mxu0 0.0
        %1387 = vmatprep.subr.mxu0 0.0
        %1388 = vmatpush1.msra.mxu0 0.0
        %1389 = vmatprep.subr.mxu0 0.0
        %1390 = vmatpush1.msra.mxu0 0.0
        %1391 = vmatprep.subr.mxu0 0.0
        %1392 = vmatpush1.msra.mxu0 0.0
        %1393 = vmatprep.subr.mxu0 0.0
        %1394 = vmatpush1.msra.mxu0 0.0
        %1395 = vmatprep.subr.mxu0 0.0
        %1396 = vmatpush1.msra.mxu0 0.0
        %1397 = vmatprep.subr.mxu0 0.0
        %1398 = vmatpush1.msra.mxu0 0.0
        %1399 = vmatprep.subr.mxu0 0.0
        %1400 = vmatpush1.msra.mxu0 0.0
        %1401 = vmatprep.subr.mxu0 0.0
        %1402 = vmatpush1.msra.mxu0 0.0
        %1403 = vmatprep.subr.mxu0 0.0
        %1404 = vmatpush1.msra.mxu0 0.0
        %1405 = vmatprep.subr.mxu0 0.0
        %1406 = vmatpush1.msra.mxu0 0.0
        %1407 = vmatprep.subr.mxu0 0.0
        %1408 = vmatpush1.msra.mxu0 0.0
        %1409 = vmatprep.subr.mxu0 0.0
        %1410 = vmatpush1.msra.mxu0 0.0
        %1411 = vmatprep.subr.mxu0 0.0
        %1412 = vmatpush1.msra.mxu0 0.0
        %1413 = vmatprep.subr.mxu0 0.0
        %1414 = vmatpush1.msra.mxu0 0.0
        %1415 = vmatprep.subr.mxu0 0.0
        %1416 = vmatpush1.msra.mxu0 0.0
        %1417 = vmatprep.subr.mxu0 0.0
        %1418 = vmatpush1.msra.mxu0 0.0
        %1419 = vmatprep.subr.mxu0 0.0
        %1420 = vmatpush1.msra.mxu0 0.0
        %1421 = vmatprep.subr.mxu0 0.0
        %1422 = vmatpush1.msra.mxu0 0.0
        %1423 = vmatprep.subr.mxu0 0.0
        %1424 = vmatpush1.msra.mxu0 0.0
        %1425 = vmatprep.subr.mxu0 0.0
        %1426 = vmatpush1.msra.mxu0 0.0
        %1427 = vmatprep.subr.mxu0 0.0
        %1428 = vmatpush1.msra.mxu0 0.0
        %1429 = vmatprep.subr.mxu0 0.0
        %1430 = vmatpush1.msra.mxu0 0.0
        %1431 = vmatprep.subr.mxu0 0.0
        %1432 = vmatpush1.msra.mxu0 0.0
        %1433 = vmatprep.subr.mxu0 0.0
        %1434 = vmatpush1.msra.mxu0 0.0
        %1435 = vmatprep.subr.mxu0 0.0
        %1436 = vmatpush1.msra.mxu0 0.0
        %1437 = vmatprep.mubr.f32.mxu0 0.0
        %1438 = vmatmul.mubr.f32.gmra.mrb[0].mxu0 %v1371
        %v1439 = vpop.f32.mrb[0].mxu0
        %v1440 = vadd.f32 %v1368, %v1439
        %v1441 = vpop.f32.mrb[0].mxu0
        %1442 = vdwg.mxu0
        %v1443 = vadd.f32 %v535, %v1440
        %v1444 = vsel %vm540, %v1443, 0.0
        %1445 = vadd.xlane.f32.xlu0 %v1444
        %v1446 = vpop.xlane.xlu0 %1445
        %v1447 = vrcp.pop 32.0
        %v1448 = vmul.f32 %v1446, %v1447
        %v1449 = vsub.f32 %v1443, %v1448
        %v1450 = vmul.f32 %v1449, %v1449
        %v1451 = vsel %vm540, %v1450, 0.0
        %1452 = vadd.xlane.f32.xlu0 %v1451
        %v1453 = vpop.xlane.xlu0 %1452
        %v1454 = vmul.f32 %v1453, %v1447
        %v1455 = vadd.f32 %v1454, 1e-05
        %v1456 = vrsqrt.pop %v1455
        %v1457 = vmul.f32 %v1449, %v1456
        %v1459 = vlaneseq
        %v1460 = vshrl.u32 %v1459, 7
        %v1461 = vsub.s32 0, %v1460
        %v1462 = vrot.slane %v436, %v1461
        %v1464 = vmul.f32 %v1457, %v1462
        %v1466 = vlaneseq
        %v1467 = vshrl.u32 %v1466, 7
        %v1468 = vsub.s32 0, %v1467
        %v1469 = vrot.slane %v437, %v1468
        %v1471 = vadd.f32 %v1464, %v1469
        %1472 = vst.msk [vmem:[%s425] sm:$0xff] %vm540, %v1471
        %s1473 = sand.u32 %s232, 1
        %s1474 = scalar_lea.sflag [#allocation6], %s1473
        %s1475 = sand.u32 %s232, 1
        %s1476 = smul.addr %s1475, 8
        %s1477 = scalar_lea.vmem [#allocation12], %s1476
        %s1478 = sand.u32 %s260, 1
        %s1479 = scalar_lea.sflag [#allocation14], %s1478
        %s1480 = sand.u32 %s260, 1
        %s1481 = smul.addr %s1480, 32
        %s1482 = scalar_lea.vmem [#allocation13], %s1481
        // Predicated region
        $region73: #{tpu_custom_call.1} parent=51 // pred_check
          %p1483 = pneg %p242
        $region74: #{tpu_custom_call.1} parent=51 // pred_check_branch
          %1485 = sbr.rel (%p1483) target = $region76
        $region75: #{tpu_custom_call.1} parent=51 // pred_region
          %s1487 = ssub.s32 128, 128
          %1488 = vsyncadd %s1474, %s1487
          %s1489 = smul.addr %s36, 2
          %s1490 = sadd.s32 %s37, %s1489
          %s1491 = smul.addr %s1490, 128
          %s1492 = scalar_lea.hbm %s8, %s1491
          %s1494 = sshll.u32 %s1477, 4
          %s1495 = int_to_ptr.vmem [resolvable:$true] %s1494
          %1497 = dma.vmem_to_hbm [thread:$0]  %s1495, 128, %s1492, %s1474
        $region76: #{tpu_custom_call.1} parent=51 // pred_fallthru
          _
        // Predicated region
        $region77: #{tpu_custom_call.1} parent=51 // pred_check
          %p1498 = pneg %p270
        $region78: #{tpu_custom_call.1} parent=51 // pred_check_branch
          %1500 = sbr.rel (%p1498) target = $region80
        $region79: #{tpu_custom_call.1} parent=51 // pred_region
          %s1502 = ssub.s32 512, 512
          %1503 = vsyncadd %s1479, %s1502
          %s1504 = smul.addr %s36, 8
          %s1505 = sadd.s32 %s37, %s1504
          %s1506 = smul.addr %s1505, 128
          %s1507 = scalar_lea.hbm %s9, %s1506
          %s1508 = sshll.u32 %s1482, 4
          %s1509 = int_to_ptr.vmem [resolvable:$true] %s1508
          %1514 = dma.vmem_to_hbm [thread:$0]  %s1509, 512, %s1507, %s1479, 128, 256, 8
        $region80: #{tpu_custom_call.1} parent=51 // pred_fallthru
          _
      $region52: #{tpu_custom_call.1} parent=5 // pred_fallthru
        _
      %p1515 = scmp.le.s32.totalorder 2, %s27
      // Predicated region
      $region81: #{tpu_custom_call.1} parent=5 // pred_check
        %p1516 = pneg %p1515
      $region82: #{tpu_custom_call.1} parent=5 // pred_check_branch
        %1518 = sbr.rel (%p1516) target = $region84
      $region83: #{tpu_custom_call.1} parent=5 // pred_region
        %s1519 = ssub.s32 %s27, 2
        // Predicated region
        $region85: #{tpu_custom_call.1} parent=83 // pred_check
          %p1520 = pneg %p248
        $region86: #{tpu_custom_call.1} parent=83 // pred_check_branch
          %1522 = sbr.rel (%p1520) target = $region88
        $region87: #{tpu_custom_call.1} parent=83 // pred_region
          %s1523 = sand.u32 %s233, 1
          %s1524 = scalar_lea.sflag [#allocation6], %s1523
          %s1525 = sand.u32 %s233, 1
          %s1526 = smul.addr %s1525, 8
          %s1527 = scalar_lea.vmem [#allocation12], %s1526
          %1528 = dma.done %s1524, 128
        $region88: #{tpu_custom_call.1} parent=83 // pred_fallthru
          _
        // Predicated region
        $region89: #{tpu_custom_call.1} parent=83 // pred_check
          %p1529 = pneg %p276
        $region90: #{tpu_custom_call.1} parent=83 // pred_check_branch
          %1531 = sbr.rel (%p1529) target = $region92
        $region91: #{tpu_custom_call.1} parent=83 // pred_region
          %s1532 = sand.u32 %s261, 1
          %s1533 = scalar_lea.sflag [#allocation14], %s1532
          %s1534 = sand.u32 %s261, 1
          %s1535 = smul.addr %s1534, 32
          %s1536 = scalar_lea.vmem [#allocation13], %s1535
          %1537 = dma.done %s1533, 512
        $region92: #{tpu_custom_call.1} parent=83 // pred_fallthru
          _
      $region84: #{tpu_custom_call.1} parent=5 // pred_fallthru
        _
    $region6: #{tpu_custom_call.1} parent=1 // loop_footer
      %s31 = sadd.s32 1, %s27
    $region7: #{tpu_custom_call.1} parent=1 // loop_footer_branch
      %26 = sbr.rel target = $region3
    $region8: #{tpu_custom_call.1} parent=1 // loop_exit
      _
    %1538 = vsyncpa [#allocation5], 1
    %s1539 = scalar_lea.sflag [#allocation5], 1
    %1540 = vsyncpa %s1539, 1
    %1541 = vsyncpa [#allocation8], 1
    %1542 = vsyncpa [#allocation11], 1
    %1543 = vsyncpa [#allocation6], 1
    %s1544 = scalar_lea.sflag [#allocation6], 1
    %1545 = vsyncpa %s1544, 1
    %1546 = vsyncpa [#allocation14], 1
    %s1547 = scalar_lea.sflag [#allocation14], 1
    %1548 = vsyncpa %s1547, 1

</llo_original>
